<compile_context>
chip_gen: v6e
topology: v6e:2x2x1
jax: 0.10.0
libtpu: 0.0.40
codegen_flags: <defaults>
</compile_context>

<pallas_src>
import functools

import numpy as np
import jax
import jax.numpy as jnp
from jax import lax
from jax.experimental import pallas as pl
from jax.experimental.pallas import tpu as pltpu

NEG_SLOPE = 0.1
BN_EPS = 1e-5


# ------------------------------ Pallas kernel ------------------------------ #

def _dot(a, b):
    return jnp.dot(a, b, preferred_element_type=jnp.float32)


def _leaky(x):
    # LeakyReLU(0.1) as one max (no compare+select).
    return jnp.maximum(x, NEG_SLOPE * x)


def _convnet_kernel(*refs, n_blocks, heights, bt):
    """Whole ConvNet forward for `bt` images stacked along the sublane axis.

    refs = [x, (M, F, bias) * n_blocks, G, b1, W2, b2, out, zbuf*, abuf, cbuf]
    """
    x_ref = refs[0]
    blk_refs = refs[1:1 + 3 * n_blocks]
    g_ref, b1_ref, w2_ref, b2_ref = refs[1 + 3 * n_blocks:5 + 3 * n_blocks]
    o_ref = refs[5 + 3 * n_blocks]
    scratch = refs[6 + 3 * n_blocks:]
    zbufs = scratch[:n_blocks]
    abuf = scratch[n_blocks]
    cbuf = scratch[n_blocks + 1]

    act = x_ref[...]                               # (bt*H, W*Cin), lane dense
    for blk in range(n_blocks):
        m_ref, f_ref, bias_ref = blk_refs[3 * blk:3 * blk + 3]
        zbuf = zbufs[blk]
        h = heights[blk]
        n_rows = bt * h

        # --- Conv2d(3x3, stride 1, pad 1), BN scale folded into M ----------
        # Horizontal taps + channel mix live in the banded M matrices; the
        # vertical +/-1 tap is a sublane roll (XLU) masked at image borders
        # (mask also kills the wrap-around across stacked images).
        row = lax.broadcasted_iota(jnp.int32, act.shape, 0) % h
        a_dn = jnp.where(row != 0, pltpu.roll(act, 1, axis=0), 0.0)
        a_up = jnp.where(row != h - 1, pltpu.roll(act, n_rows - 1, axis=0), 0.0)
        z = _dot(act, m_ref[1])                              # center tap inits z
        z = z + _dot(a_dn, m_ref[0]) + _dot(a_up, m_ref[2]) + bias_ref[...]

        # --- MaxPool2d(2) ---------------------------------------------------
        # Rows: stride-2 sublane reads from scratch; columns: exact 0/1
        # selection matmuls (lanes are (w, c)-interleaved).
        zbuf[...] = z
        half = n_rows // 2
        zv = jnp.maximum(zbuf[pl.ds(0, half, stride=2), :],
                         zbuf[pl.ds(1, half, stride=2), :])
        zh = jnp.maximum(_dot(zv, f_ref[0]), _dot(zv, f_ref[1]))

        act = _leaky(zh)          # (bt*h/2, (w/2)*Cout); Dropout2d eval = id

    # --- classifier: Conv2d(h x w) -> LeakyReLU -> Conv2d(1x1) ---------------
    # Flatten (bt*hf, wf*Cf) -> (bt, hf*wf*Cf) with strided row reads, then one
    # K = hf*wf*Cf matmul; the 1x1 conv is a second (lane-dense padded) matmul.
    abuf[...] = act
    hf = abuf.shape[0] // bt
    wc = abuf.shape[1]
    for i in range(hf):
        cbuf[:, i * wc:(i + 1) * wc] = abuf[pl.ds(i, bt, stride=hf), :]
    z1 = _leaky(_dot(cbuf[...], g_ref[...]) + b1_ref[...])
    o_ref[0] = _dot(z1, w2_ref[...]) + b2_ref[...]   # (bt, 128) padded scores


def convnet_forward(x_nchw, prep):
    """mode='f_conv' eval forward; the whole network is one pallas_call."""
    B, Cin, H, Wd = x_nchw.shape
    n_blocks = len(prep["blocks"])
    heights = prep["heights"]
    couts = prep["couts"]
    c_out, c_pad = prep["c_out"], prep["c_pad"]

    # Batch blocking: fold images into sublanes, but keep >= 2 parallel grid
    # steps so both v7x TensorCores get work (1-TC chips just loop over them).
    bt = B // 2 if (B >= 2 and B % 2 == 0) else 1
    steps = B // bt

    # One cheap XLA transpose: NCHW -> lane-dense (B*H, W*Cin) rows.
    x_rows = jnp.transpose(x_nchw.astype(jnp.float32),
                           (0, 2, 3, 1)).reshape(B * H, Wd * Cin)

    consts = [t for blk in prep["blocks"] for t in blk] + list(prep["cls"])
    vmem_resident = pl.BlockSpec(memory_space=pltpu.MemorySpace.VMEM)

    scratch = []
    h, w = H, Wd
    for blk in range(n_blocks):
        scratch.append(pltpu.VMEM((bt * h, w * couts[blk]), jnp.float32))
        h //= 2
        w //= 2
    cf = couts[-1]
    scratch.append(pltpu.VMEM((bt * h, w * cf), jnp.float32))    # final features
    scratch.append(pltpu.VMEM((bt, h * w * cf), jnp.float32))    # flattened rows

    kern = functools.partial(_convnet_kernel, n_blocks=n_blocks,
                             heights=heights, bt=bt)

    out = pl.pallas_call(
        kern,
        out_shape=jax.ShapeDtypeStruct((steps, bt, c_pad), jnp.float32),
        grid=(steps,),
        in_specs=[pl.BlockSpec((bt * H, Wd * Cin), lambda b: (b, 0))]
                 + [vmem_resident] * len(consts),
        out_specs=pl.BlockSpec((1, bt, c_pad), lambda b: (b, 0, 0)),
        scratch_shapes=scratch,
        compiler_params=pltpu.CompilerParams(
            dimension_semantics=("parallel",)),
    )(x_rows, *consts)
    return out.reshape(B, c_pad)[:, :c_out].reshape(B, c_out, 1, 1)


# --------------- host-side (one-time) parameter preprocessing -------------- #

def _make_block_consts(Wc, b, gamma, beta, mean, var, H, Win):
    """Constant matrices for one fused conv block (lane layout = w*C + c).

    M[di]: banded matrix implementing the horizontal 3 taps + channel mix
           (with horizontal zero padding and BN scale folded in),
    F    : 0/1 selection matrices for the lane (width) half of the 2x2 pool,
    bias : conv bias + BN shift, tiled along the (w, c_out) lane axis.
    """
    Wc = np.asarray(Wc, np.float32)
    b = np.asarray(b, np.float32)
    gamma = np.asarray(gamma, np.float32)
    beta = np.asarray(beta, np.float32)
    mean = np.asarray(mean, np.float32)
    var = np.asarray(var, np.float32)
    Cout, Cin, kh, kw = Wc.shape
    assert kh == 3 and kw == 3

    s = gamma / np.sqrt(var + BN_EPS)          # eval BN: real running stats
    Wf = Wc * s[:, None, None, None]           # fold BN scale into the weights
    Nin, Nout = Win * Cin, Win * Cout

    M = np.zeros((3, Nin, Nout), np.float32)
    for di in range(3):
        for dj in range(3):
            for jo in range(Win):
                ji = jo + dj - 1
                if 0 <= ji < Win:
                    for ci in range(Cin):
                        M[di, ji * Cin + ci, jo * Cout:(jo + 1) * Cout] = \
                            Wf[:, ci, di, dj]

    Wp = Win // 2
    F = np.zeros((2, Nout, Wp * Cout), np.float32)
    for j2 in range(Wp):
        for c in range(Cout):
            F[0, (2 * j2) * Cout + c, j2 * Cout + c] = 1.0
            F[1, (2 * j2 + 1) * Cout + c, j2 * Cout + c] = 1.0

    bias_row = np.tile(s * b + beta - s * mean, Win)[None, :].astype(np.float32)
    return M, F, bias_row


def prepare_params(params, H, Wd):
    """One-time transform of PyTorch-layout params into kernel constants."""
    prep = {"blocks": [], "couts": []}
    h, w = H, Wd
    for (Wc, b, gamma, beta, mean, var) in params["blocks"]:
        M, F, bias = _make_block_consts(Wc, b, gamma, beta, mean, var, h, w)
        prep["blocks"].append(tuple(jnp.asarray(t) for t in (M, F, bias)))
        prep["couts"].append(int(np.asarray(Wc).shape[0]))
        h //= 2
        w //= 2

    W1, b1 = params["c1"]
    W2, b2 = params["c2"]
    W1 = np.asarray(W1, np.float32)
    b1 = np.asarray(b1, np.float32)
    W2 = np.asarray(W2, np.float32)
    b2 = np.asarray(b2, np.float32)
    C1, Cf, kh, kw = W1.shape
    assert (kh, kw) == (h, w), "classifier conv must cover the feature map"
    # G[h*wf*Cf + w'*Cf + c, n] = W1[n, c, h, w'] (matches the flattened rows).
    G = np.transpose(W1, (2, 3, 1, 0)).reshape(kh * kw * Cf, C1)

    c_out = int(W2.shape[0])
    c_pad = max(128, -(-c_out // 128) * 128)         # lane-dense padded width
    W2p = np.zeros((C1, c_pad), np.float32)
    W2p[:, :c_out] = W2.reshape(c_out, C1).T
    b2p = np.zeros((1, c_pad), np.float32)
    b2p[0, :c_out] = b2

    prep["cls"] = (jnp.asarray(G), jnp.asarray(b1[None, :]),
                   jnp.asarray(W2p), jnp.asarray(b2p))
    prep["heights"] = tuple(H // (2 ** i) for i in range(len(params["blocks"])))
    prep["c_out"] = c_out
    prep["c_pad"] = c_pad
    return prep


# --------------------------------- setup ----------------------------------- #

def make_params(key, fe_dims, c_dims, k_size, h, w):
    params = {"blocks": []}
    for in_dim, out_dim in zip(fe_dims[:-1], fe_dims[1:]):
        key, k1, k2, k3 = jax.random.split(key, 4)
        W = jax.random.normal(k1, (out_dim, in_dim, k_size, k_size), jnp.float32) * 0.1
        b = jax.random.normal(k2, (out_dim,), jnp.float32) * 0.1
        gamma = jax.random.uniform(k3, (out_dim,), jnp.float32)  # nn.init.uniform_(bn.weight)
        beta = jnp.zeros((out_dim,), jnp.float32)
        mean = jnp.zeros((out_dim,), jnp.float32)     # fresh BN running stats
        var = jnp.ones((out_dim,), jnp.float32)
        params["blocks"].append((W, b, gamma, beta, mean, var))
    dims = [fe_dims[-1], *c_dims]
    key, k1, k2, k3, k4 = jax.random.split(key, 5)
    params["c1"] = (
        jax.random.normal(k1, (dims[1], dims[0], h, w), jnp.float32) * 0.05,
        jax.random.normal(k2, (dims[1],), jnp.float32) * 0.05,
    )
    params["c2"] = (
        jax.random.normal(k3, (dims[2], dims[1], 1, 1), jnp.float32) * 0.05,
        jax.random.normal(k4, (dims[2],), jnp.float32) * 0.05,
    )
    return params


def reference_forward(x, params):
    """Plain-JAX (XLA) reference with PyTorch eval-mode semantics."""
    a = x.astype(jnp.float32)
    for (Wc, b, gamma, beta, mean, var) in params["blocks"]:
        Bn, C, Hh, Ww = a.shape
        ap = jnp.pad(a, ((0, 0), (0, 0), (1, 1), (1, 1)))
        y = b[None, :, None, None] + sum(
            jnp.einsum('bchw,oc->bohw', ap[:, :, di:di + Hh, dj:dj + Ww],
                       Wc[:, :, di, dj], precision='highest')
            for di in range(3) for dj in range(3))
        s = gamma / jnp.sqrt(var + BN_EPS)
        y = (y - mean[None, :, None, None]) * s[None, :, None, None] \
            + beta[None, :, None, None]
        y = y.reshape(Bn, -1, Hh // 2, 2, Ww // 2, 2).max(axis=(3, 5))
        a = jnp.where(y >= 0, y, NEG_SLOPE * y)
    W1, b1 = params["c1"]
    W2, b2 = params["c2"]
    z1 = jnp.einsum('bchw,nchw->bn', a, W1, precision='highest') + b1[None, :]
    z1 = jnp.where(z1 >= 0, z1, NEG_SLOPE * z1)
    z2 = jnp.einsum('bn,mn->bm', z1, W2.reshape(W2.shape[0], -1),
                    precision='highest') + b2[None, :]
    return z2.reshape(z2.shape[0], z2.shape[1], 1, 1)


if __name__ == "__main__":
    # ConvNet(fe_dims=[4, 8, 16], c_dims=[32, 10], k_size=3, padding=1, mode='f_conv')
    fe_dims = [4, 8, 16]
    c_dims = [32, 10]
    B, H, W_in = 2, 16, 16
    n_blocks = len(fe_dims) - 1
    h = H // (2 ** n_blocks)      # conv preserves HW (pad=1), pool halves
    w = W_in // (2 ** n_blocks)

    key = jax.random.PRNGKey(0)
    key, kx = jax.random.split(key)
    x = jax.random.normal(kx, (B, fe_dims[0], H, W_in), jnp.float32)  # NCHW

    params = make_params(key, fe_dims, c_dims, k_size=3, h=h, w=w)
    prep = prepare_params(params, H, W_in)

    out = convnet_forward(x, prep)
    jax.block_until_ready(out)
    assert out.shape == (B, c_dims[-1], 1, 1), out.shape

    ref = reference_forward(x, params)
    np.testing.assert_allclose(np.asarray(out), np.asarray(ref),
                               rtol=2e-3, atol=2e-3)

    print("KERNEL_OK")
</pallas_src>

<mosaic_0001>
module attributes {stable_mosaic.version = 11 : i64} {
  func.func @_convnet_kernel(%arg0: i32, %arg1: memref<16x64xf32, #tpu.memory_space<vmem>>, %arg2: memref<3x64x128xf32, #tpu.memory_space<vmem>>, %arg3: memref<2x128x64xf32, #tpu.memory_space<vmem>>, %arg4: memref<1x128xf32, #tpu.memory_space<vmem>>, %arg5: memref<3x64x128xf32, #tpu.memory_space<vmem>>, %arg6: memref<2x128x64xf32, #tpu.memory_space<vmem>>, %arg7: memref<1x128xf32, #tpu.memory_space<vmem>>, %arg8: memref<256x32xf32, #tpu.memory_space<vmem>>, %arg9: memref<1x32xf32, #tpu.memory_space<vmem>>, %arg10: memref<32x128xf32, #tpu.memory_space<vmem>>, %arg11: memref<1x128xf32, #tpu.memory_space<vmem>>, %arg12: memref<1x1x128xf32, #tpu.memory_space<vmem>>, %arg13: memref<16x128xf32, #tpu.memory_space<vmem>>, %arg14: memref<8x128xf32, #tpu.memory_space<vmem>>, %arg15: memref<4x64xf32, #tpu.memory_space<vmem>>, %arg16: memref<1x256xf32, #tpu.memory_space<vmem>>) attributes {dimension_semantics = [#tpu.dimension_semantics<parallel>], iteration_bounds = array<i64: 2>, scalar_prefetch = 0 : i64, scratch_operands = 4 : i64, tpu.core_type = #tpu.core_type<tc>, window_params = [{transform_indices = @transform_0, window_bounds = array<i64: 16, 64>}, {pipeline_mode = #tpu.pipeline_mode<synchronous>, transform_indices = @transform_1, window_bounds = array<i64: 3, 64, 128>}, {pipeline_mode = #tpu.pipeline_mode<synchronous>, transform_indices = @transform_2, window_bounds = array<i64: 2, 128, 64>}, {pipeline_mode = #tpu.pipeline_mode<synchronous>, transform_indices = @transform_3, window_bounds = array<i64: 1, 128>}, {pipeline_mode = #tpu.pipeline_mode<synchronous>, transform_indices = @transform_4, window_bounds = array<i64: 3, 64, 128>}, {pipeline_mode = #tpu.pipeline_mode<synchronous>, transform_indices = @transform_5, window_bounds = array<i64: 2, 128, 64>}, {pipeline_mode = #tpu.pipeline_mode<synchronous>, transform_indices = @transform_6, window_bounds = array<i64: 1, 128>}, {pipeline_mode = #tpu.pipeline_mode<synchronous>, transform_indices = @transform_7, window_bounds = array<i64: 256, 32>}, {pipeline_mode = #tpu.pipeline_mode<synchronous>, transform_indices = @transform_8, window_bounds = array<i64: 1, 32>}, {pipeline_mode = #tpu.pipeline_mode<synchronous>, transform_indices = @transform_9, window_bounds = array<i64: 32, 128>}, {pipeline_mode = #tpu.pipeline_mode<synchronous>, transform_indices = @transform_10, window_bounds = array<i64: 1, 128>}, {transform_indices = @transform_11, window_bounds = array<i64: 1, 1, 128>}]} {
    %c0 = arith.constant 0 : index
    %c0_0 = arith.constant 0 : index
    %0 = vector.load %arg1[%c0, %c0_0] : memref<16x64xf32, #tpu.memory_space<vmem>>, vector<16x64xf32>
    %1 = tpu.iota {dimensions = array<i32: 0>} : vector<16x64xi32>
    %c16_i32 = arith.constant 16 : i32
    %c0_i32 = arith.constant 0 : i32
    %2 = arith.cmpi eq, %c16_i32, %c0_i32 : i32
    %c1_i32 = arith.constant 1 : i32
    %3 = arith.select %2, %c1_i32, %c16_i32 : i32
    %4 = vector.broadcast %3 : i32 to vector<16x64xi32>
    %5 = arith.remsi %1, %4 : vector<16x64xi32>
    %c0_i32_1 = arith.constant 0 : i32
    %6 = vector.broadcast %c0_i32_1 : i32 to vector<16x64xi32>
    %7 = arith.cmpi ne, %5, %6 : vector<16x64xi32>
    %c0_i32_2 = arith.constant 0 : i32
    %8 = vector.broadcast %c0_i32_2 : i32 to vector<16x64xi32>
    %9 = arith.cmpi slt, %5, %8 : vector<16x64xi32>
    %c0_i32_3 = arith.constant 0 : i32
    %10 = arith.cmpi slt, %3, %c0_i32_3 : i32
    %11 = vector.broadcast %10 : i1 to vector<16x64xi1>
    %12 = vector.broadcast %11 : vector<16x64xi1> to vector<16x64xi1>
    %13 = arith.xori %9, %12 : vector<16x64xi1>
    %14 = arith.andi %13, %7 : vector<16x64xi1>
    %15 = vector.broadcast %3 : i32 to vector<16x64xi32>
    %16 = arith.addi %5, %15 : vector<16x64xi32>
    %17 = arith.select %14, %16, %5 : vector<16x64xi1>, vector<16x64xi32>
    %c0_i32_4 = arith.constant 0 : i32
    %18 = vector.broadcast %c0_i32_4 : i32 to vector<16x64xi32>
    %19 = arith.cmpi ne, %17, %18 : vector<16x64xi32>
    %c1_i32_5 = arith.constant 1 : i32
    %20 = tpu.dynamic_rotate %0 by %c1_i32_5 dim 0 : vector<16x64xf32>, i32 -> vector<16x64xf32>
    %cst = arith.constant 0.000000e+00 : f32
    %21 = vector.broadcast %cst : f32 to vector<16x64xf32>
    %22 = arith.select %19, %20, %21 : vector<16x64xi1>, vector<16x64xf32>
    %c15_i32 = arith.constant 15 : i32
    %23 = vector.broadcast %c15_i32 : i32 to vector<16x64xi32>
    %24 = arith.cmpi ne, %17, %23 : vector<16x64xi32>
    %c15_i32_6 = arith.constant 15 : i32
    %25 = tpu.dynamic_rotate %0 by %c15_i32_6 dim 0 : vector<16x64xf32>, i32 -> vector<16x64xf32>
    %cst_7 = arith.constant 0.000000e+00 : f32
    %26 = vector.broadcast %cst_7 : f32 to vector<16x64xf32>
    %27 = arith.select %24, %25, %26 : vector<16x64xi1>, vector<16x64xf32>
    %c1 = arith.constant 1 : index
    %c0_8 = arith.constant 0 : index
    %c0_9 = arith.constant 0 : index
    %28 = vector.load %arg2[%c1, %c0_8, %c0_9] : memref<3x64x128xf32, #tpu.memory_space<vmem>>, vector<1x64x128xf32>
    %29 = vector.shape_cast %28 : vector<1x64x128xf32> to vector<64x128xf32>
    %cst_10 = arith.constant dense<0.000000e+00> : vector<16x128xf32>
    %30 = tpu.matmul %0, %29, %cst_10 {dimension_numbers = #tpu.dot_dimension_numbers<[1], [0], [0], [1], [0, 0, 1, 1], [], []>} : vector<16x64xf32>, vector<64x128xf32>, vector<16x128xf32> -> vector<16x128xf32>
    %c0_11 = arith.constant 0 : index
    %c0_12 = arith.constant 0 : index
    %c0_13 = arith.constant 0 : index
    %31 = vector.load %arg2[%c0_11, %c0_12, %c0_13] : memref<3x64x128xf32, #tpu.memory_space<vmem>>, vector<1x64x128xf32>
    %32 = vector.shape_cast %31 : vector<1x64x128xf32> to vector<64x128xf32>
    %cst_14 = arith.constant dense<0.000000e+00> : vector<16x128xf32>
    %33 = tpu.matmul %22, %32, %cst_14 {dimension_numbers = #tpu.dot_dimension_numbers<[1], [0], [0], [1], [0, 0, 1, 1], [], []>} : vector<16x64xf32>, vector<64x128xf32>, vector<16x128xf32> -> vector<16x128xf32>
    %34 = arith.addf %30, %33 : vector<16x128xf32>
    %c2 = arith.constant 2 : index
    %c0_15 = arith.constant 0 : index
    %c0_16 = arith.constant 0 : index
    %35 = vector.load %arg2[%c2, %c0_15, %c0_16] : memref<3x64x128xf32, #tpu.memory_space<vmem>>, vector<1x64x128xf32>
    %36 = vector.shape_cast %35 : vector<1x64x128xf32> to vector<64x128xf32>
    %cst_17 = arith.constant dense<0.000000e+00> : vector<16x128xf32>
    %37 = tpu.matmul %27, %36, %cst_17 {dimension_numbers = #tpu.dot_dimension_numbers<[1], [0], [0], [1], [0, 0, 1, 1], [], []>} : vector<16x64xf32>, vector<64x128xf32>, vector<16x128xf32> -> vector<16x128xf32>
    %38 = arith.addf %34, %37 : vector<16x128xf32>
    %c0_18 = arith.constant 0 : index
    %c0_19 = arith.constant 0 : index
    %39 = vector.load %arg4[%c0_18, %c0_19] : memref<1x128xf32, #tpu.memory_space<vmem>>, vector<1x128xf32>
    %40 = vector.broadcast %39 : vector<1x128xf32> to vector<16x128xf32>
    %41 = arith.addf %38, %40 : vector<16x128xf32>
    %c0_20 = arith.constant 0 : index
    %c0_21 = arith.constant 0 : index
    %42 = vector.load %arg13[%c0_20, %c0_21] : memref<16x128xf32, #tpu.memory_space<vmem>>, vector<16x128xf32>
    tpu.vector_store %arg13[%c0_20, %c0_21], %41 {strides = array<i32>} : memref<16x128xf32, #tpu.memory_space<vmem>>, vector<16x128xf32>,
    %c0_22 = arith.constant 0 : index
    %c0_23 = arith.constant 0 : index
    %43 = tpu.strided_load %arg13[%c0_22, %c0_23] {strides = array<i32: 2, 1>} : memref<16x128xf32, #tpu.memory_space<vmem>>, vector<8x128xf32>
    %c1_24 = arith.constant 1 : index
    %c0_25 = arith.constant 0 : index
    %44 = tpu.strided_load %arg13[%c1_24, %c0_25] {strides = array<i32: 2, 1>} : memref<16x128xf32, #tpu.memory_space<vmem>>, vector<8x128xf32>
    %45 = arith.maximumf %43, %44 : vector<8x128xf32>
    %c0_26 = arith.constant 0 : index
    %c0_27 = arith.constant 0 : index
    %c0_28 = arith.constant 0 : index
    %46 = vector.load %arg3[%c0_26, %c0_27, %c0_28] : memref<2x128x64xf32, #tpu.memory_space<vmem>>, vector<1x128x64xf32>
    %47 = vector.shape_cast %46 : vector<1x128x64xf32> to vector<128x64xf32>
    %cst_29 = arith.constant dense<0.000000e+00> : vector<8x64xf32>
    %48 = tpu.matmul %45, %47, %cst_29 {dimension_numbers = #tpu.dot_dimension_numbers<[1], [0], [0], [1], [0, 0, 1, 1], [], []>} : vector<8x128xf32>, vector<128x64xf32>, vector<8x64xf32> -> vector<8x64xf32>
    %c1_30 = arith.constant 1 : index
    %c0_31 = arith.constant 0 : index
    %c0_32 = arith.constant 0 : index
    %49 = vector.load %arg3[%c1_30, %c0_31, %c0_32] : memref<2x128x64xf32, #tpu.memory_space<vmem>>, vector<1x128x64xf32>
    %50 = vector.shape_cast %49 : vector<1x128x64xf32> to vector<128x64xf32>
    %cst_33 = arith.constant dense<0.000000e+00> : vector<8x64xf32>
    %51 = tpu.matmul %45, %50, %cst_33 {dimension_numbers = #tpu.dot_dimension_numbers<[1], [0], [0], [1], [0, 0, 1, 1], [], []>} : vector<8x128xf32>, vector<128x64xf32>, vector<8x64xf32> -> vector<8x64xf32>
    %52 = arith.maximumf %48, %51 : vector<8x64xf32>
    %cst_34 = arith.constant 1.000000e-01 : f32
    %53 = vector.broadcast %cst_34 : f32 to vector<8x64xf32>
    %54 = arith.mulf %53, %52 : vector<8x64xf32>
    %55 = arith.maximumf %52, %54 : vector<8x64xf32>
    %56 = tpu.iota {dimensions = array<i32: 0>} : vector<8x64xi32>
    %c8_i32 = arith.constant 8 : i32
    %c0_i32_35 = arith.constant 0 : i32
    %57 = arith.cmpi eq, %c8_i32, %c0_i32_35 : i32
    %c1_i32_36 = arith.constant 1 : i32
    %58 = arith.select %57, %c1_i32_36, %c8_i32 : i32
    %59 = vector.broadcast %58 : i32 to vector<8x64xi32>
    %60 = arith.remsi %56, %59 : vector<8x64xi32>
    %c0_i32_37 = arith.constant 0 : i32
    %61 = vector.broadcast %c0_i32_37 : i32 to vector<8x64xi32>
    %62 = arith.cmpi ne, %60, %61 : vector<8x64xi32>
    %c0_i32_38 = arith.constant 0 : i32
    %63 = vector.broadcast %c0_i32_38 : i32 to vector<8x64xi32>
    %64 = arith.cmpi slt, %60, %63 : vector<8x64xi32>
    %c0_i32_39 = arith.constant 0 : i32
    %65 = arith.cmpi slt, %58, %c0_i32_39 : i32
    %66 = vector.broadcast %65 : i1 to vector<8x64xi1>
    %67 = vector.broadcast %66 : vector<8x64xi1> to vector<8x64xi1>
    %68 = arith.xori %64, %67 : vector<8x64xi1>
    %69 = arith.andi %68, %62 : vector<8x64xi1>
    %70 = vector.broadcast %58 : i32 to vector<8x64xi32>
    %71 = arith.addi %60, %70 : vector<8x64xi32>
    %72 = arith.select %69, %71, %60 : vector<8x64xi1>, vector<8x64xi32>
    %c0_i32_40 = arith.constant 0 : i32
    %73 = vector.broadcast %c0_i32_40 : i32 to vector<8x64xi32>
    %74 = arith.cmpi ne, %72, %73 : vector<8x64xi32>
    %c1_i32_41 = arith.constant 1 : i32
    %75 = tpu.dynamic_rotate %55 by %c1_i32_41 dim 0 : vector<8x64xf32>, i32 -> vector<8x64xf32>
    %cst_42 = arith.constant 0.000000e+00 : f32
    %76 = vector.broadcast %cst_42 : f32 to vector<8x64xf32>
    %77 = arith.select %74, %75, %76 : vector<8x64xi1>, vector<8x64xf32>
    %c7_i32 = arith.constant 7 : i32
    %78 = vector.broadcast %c7_i32 : i32 to vector<8x64xi32>
    %79 = arith.cmpi ne, %72, %78 : vector<8x64xi32>
    %c7_i32_43 = arith.constant 7 : i32
    %80 = tpu.dynamic_rotate %55 by %c7_i32_43 dim 0 : vector<8x64xf32>, i32 -> vector<8x64xf32>
    %cst_44 = arith.constant 0.000000e+00 : f32
    %81 = vector.broadcast %cst_44 : f32 to vector<8x64xf32>
    %82 = arith.select %79, %80, %81 : vector<8x64xi1>, vector<8x64xf32>
    %c1_45 = arith.constant 1 : index
    %c0_46 = arith.constant 0 : index
    %c0_47 = arith.constant 0 : index
    %83 = vector.load %arg5[%c1_45, %c0_46, %c0_47] : memref<3x64x128xf32, #tpu.memory_space<vmem>>, vector<1x64x128xf32>
    %84 = vector.shape_cast %83 : vector<1x64x128xf32> to vector<64x128xf32>
    %cst_48 = arith.constant dense<0.000000e+00> : vector<8x128xf32>
    %85 = tpu.matmul %55, %84, %cst_48 {dimension_numbers = #tpu.dot_dimension_numbers<[1], [0], [0], [1], [0, 0, 1, 1], [], []>} : vector<8x64xf32>, vector<64x128xf32>, vector<8x128xf32> -> vector<8x128xf32>
    %c0_49 = arith.constant 0 : index
    %c0_50 = arith.constant 0 : index
    %c0_51 = arith.constant 0 : index
    %86 = vector.load %arg5[%c0_49, %c0_50, %c0_51] : memref<3x64x128xf32, #tpu.memory_space<vmem>>, vector<1x64x128xf32>
    %87 = vector.shape_cast %86 : vector<1x64x128xf32> to vector<64x128xf32>
    %cst_52 = arith.constant dense<0.000000e+00> : vector<8x128xf32>
    %88 = tpu.matmul %77, %87, %cst_52 {dimension_numbers = #tpu.dot_dimension_numbers<[1], [0], [0], [1], [0, 0, 1, 1], [], []>} : vector<8x64xf32>, vector<64x128xf32>, vector<8x128xf32> -> vector<8x128xf32>
    %89 = arith.addf %85, %88 : vector<8x128xf32>
    %c2_53 = arith.constant 2 : index
    %c0_54 = arith.constant 0 : index
    %c0_55 = arith.constant 0 : index
    %90 = vector.load %arg5[%c2_53, %c0_54, %c0_55] : memref<3x64x128xf32, #tpu.memory_space<vmem>>, vector<1x64x128xf32>
    %91 = vector.shape_cast %90 : vector<1x64x128xf32> to vector<64x128xf32>
    %cst_56 = arith.constant dense<0.000000e+00> : vector<8x128xf32>
    %92 = tpu.matmul %82, %91, %cst_56 {dimension_numbers = #tpu.dot_dimension_numbers<[1], [0], [0], [1], [0, 0, 1, 1], [], []>} : vector<8x64xf32>, vector<64x128xf32>, vector<8x128xf32> -> vector<8x128xf32>
    %93 = arith.addf %89, %92 : vector<8x128xf32>
    %c0_57 = arith.constant 0 : index
    %c0_58 = arith.constant 0 : index
    %94 = vector.load %arg7[%c0_57, %c0_58] : memref<1x128xf32, #tpu.memory_space<vmem>>, vector<1x128xf32>
    %95 = vector.broadcast %94 : vector<1x128xf32> to vector<8x128xf32>
    %96 = arith.addf %93, %95 : vector<8x128xf32>
    %c0_59 = arith.constant 0 : index
    %c0_60 = arith.constant 0 : index
    %97 = vector.load %arg14[%c0_59, %c0_60] : memref<8x128xf32, #tpu.memory_space<vmem>>, vector<8x128xf32>
    tpu.vector_store %arg14[%c0_59, %c0_60], %96 {strides = array<i32>} : memref<8x128xf32, #tpu.memory_space<vmem>>, vector<8x128xf32>,
    %c0_61 = arith.constant 0 : index
    %c0_62 = arith.constant 0 : index
    %98 = tpu.strided_load %arg14[%c0_61, %c0_62] {strides = array<i32: 2, 1>} : memref<8x128xf32, #tpu.memory_space<vmem>>, vector<4x128xf32>
    %c1_63 = arith.constant 1 : index
    %c0_64 = arith.constant 0 : index
    %99 = tpu.strided_load %arg14[%c1_63, %c0_64] {strides = array<i32: 2, 1>} : memref<8x128xf32, #tpu.memory_space<vmem>>, vector<4x128xf32>
    %100 = arith.maximumf %98, %99 : vector<4x128xf32>
    %c0_65 = arith.constant 0 : index
    %c0_66 = arith.constant 0 : index
    %c0_67 = arith.constant 0 : index
    %101 = vector.load %arg6[%c0_65, %c0_66, %c0_67] : memref<2x128x64xf32, #tpu.memory_space<vmem>>, vector<1x128x64xf32>
    %102 = vector.shape_cast %101 : vector<1x128x64xf32> to vector<128x64xf32>
    %cst_68 = arith.constant dense<0.000000e+00> : vector<4x64xf32>
    %103 = tpu.matmul %100, %102, %cst_68 {dimension_numbers = #tpu.dot_dimension_numbers<[1], [0], [0], [1], [0, 0, 1, 1], [], []>} : vector<4x128xf32>, vector<128x64xf32>, vector<4x64xf32> -> vector<4x64xf32>
    %c1_69 = arith.constant 1 : index
    %c0_70 = arith.constant 0 : index
    %c0_71 = arith.constant 0 : index
    %104 = vector.load %arg6[%c1_69, %c0_70, %c0_71] : memref<2x128x64xf32, #tpu.memory_space<vmem>>, vector<1x128x64xf32>
    %105 = vector.shape_cast %104 : vector<1x128x64xf32> to vector<128x64xf32>
    %cst_72 = arith.constant dense<0.000000e+00> : vector<4x64xf32>
    %106 = tpu.matmul %100, %105, %cst_72 {dimension_numbers = #tpu.dot_dimension_numbers<[1], [0], [0], [1], [0, 0, 1, 1], [], []>} : vector<4x128xf32>, vector<128x64xf32>, vector<4x64xf32> -> vector<4x64xf32>
    %107 = arith.maximumf %103, %106 : vector<4x64xf32>
    %cst_73 = arith.constant 1.000000e-01 : f32
    %108 = vector.broadcast %cst_73 : f32 to vector<4x64xf32>
    %109 = arith.mulf %108, %107 : vector<4x64xf32>
    %110 = arith.maximumf %107, %109 : vector<4x64xf32>
    %c0_74 = arith.constant 0 : index
    %c0_75 = arith.constant 0 : index
    %111 = vector.load %arg15[%c0_74, %c0_75] : memref<4x64xf32, #tpu.memory_space<vmem>>, vector<4x64xf32>
    tpu.vector_store %arg15[%c0_74, %c0_75], %110 {strides = array<i32>} : memref<4x64xf32, #tpu.memory_space<vmem>>, vector<4x64xf32>,
    %c0_76 = arith.constant 0 : index
    %c0_77 = arith.constant 0 : index
    %112 = tpu.strided_load %arg15[%c0_76, %c0_77] {strides = array<i32: 4, 1>} : memref<4x64xf32, #tpu.memory_space<vmem>>, vector<1x64xf32>
    %c0_78 = arith.constant 0 : index
    %c0_79 = arith.constant 0 : index
    %113 = vector.load %arg16[%c0_78, %c0_79] : memref<1x256xf32, #tpu.memory_space<vmem>>, vector<1x64xf32>
    tpu.vector_store %arg16[%c0_78, %c0_79], %112 {strides = array<i32>} : memref<1x256xf32, #tpu.memory_space<vmem>>, vector<1x64xf32>,
    %c1_80 = arith.constant 1 : index
    %c0_81 = arith.constant 0 : index
    %114 = tpu.strided_load %arg15[%c1_80, %c0_81] {strides = array<i32: 4, 1>} : memref<4x64xf32, #tpu.memory_space<vmem>>, vector<1x64xf32>
    %c0_82 = arith.constant 0 : index
    %c64 = arith.constant 64 : index
    %115 = vector.load %arg16[%c0_82, %c64] : memref<1x256xf32, #tpu.memory_space<vmem>>, vector<1x64xf32>
    tpu.vector_store %arg16[%c0_82, %c64], %114 {strides = array<i32>} : memref<1x256xf32, #tpu.memory_space<vmem>>, vector<1x64xf32>,
    %c2_83 = arith.constant 2 : index
    %c0_84 = arith.constant 0 : index
    %116 = tpu.strided_load %arg15[%c2_83, %c0_84] {strides = array<i32: 4, 1>} : memref<4x64xf32, #tpu.memory_space<vmem>>, vector<1x64xf32>
    %c0_85 = arith.constant 0 : index
    %c128 = arith.constant 128 : index
    %117 = vector.load %arg16[%c0_85, %c128] : memref<1x256xf32, #tpu.memory_space<vmem>>, vector<1x64xf32>
    tpu.vector_store %arg16[%c0_85, %c128], %116 {strides = array<i32>} : memref<1x256xf32, #tpu.memory_space<vmem>>, vector<1x64xf32>,
    %c3 = arith.constant 3 : index
    %c0_86 = arith.constant 0 : index
    %118 = tpu.strided_load %arg15[%c3, %c0_86] {strides = array<i32: 4, 1>} : memref<4x64xf32, #tpu.memory_space<vmem>>, vector<1x64xf32>
    %c0_87 = arith.constant 0 : index
    %c192 = arith.constant 192 : index
    %119 = vector.load %arg16[%c0_87, %c192] : memref<1x256xf32, #tpu.memory_space<vmem>>, vector<1x64xf32>
    tpu.vector_store %arg16[%c0_87, %c192], %118 {strides = array<i32>} : memref<1x256xf32, #tpu.memory_space<vmem>>, vector<1x64xf32>,
    %c0_88 = arith.constant 0 : index
    %c0_89 = arith.constant 0 : index
    %120 = vector.load %arg16[%c0_88, %c0_89] : memref<1x256xf32, #tpu.memory_space<vmem>>, vector<1x256xf32>
    %c0_90 = arith.constant 0 : index
    %c0_91 = arith.constant 0 : index
    %121 = vector.load %arg8[%c0_90, %c0_91] : memref<256x32xf32, #tpu.memory_space<vmem>>, vector<256x32xf32>
    %cst_92 = arith.constant dense<0.000000e+00> : vector<1x32xf32>
    %122 = tpu.matmul %120, %121, %cst_92 {dimension_numbers = #tpu.dot_dimension_numbers<[1], [0], [0], [1], [0, 0, 1, 1], [], []>} : vector<1x256xf32>, vector<256x32xf32>, vector<1x32xf32> -> vector<1x32xf32>
    %c0_93 = arith.constant 0 : index
    %c0_94 = arith.constant 0 : index
    %123 = vector.load %arg9[%c0_93, %c0_94] : memref<1x32xf32, #tpu.memory_space<vmem>>, vector<1x32xf32>
    %124 = arith.addf %122, %123 : vector<1x32xf32>
    %cst_95 = arith.constant 1.000000e-01 : f32
    %125 = vector.broadcast %cst_95 : f32 to vector<1x32xf32>
    %126 = arith.mulf %125, %124 : vector<1x32xf32>
    %127 = arith.maximumf %124, %126 : vector<1x32xf32>
    %c0_96 = arith.constant 0 : index
    %c0_97 = arith.constant 0 : index
    %128 = vector.load %arg10[%c0_96, %c0_97] : memref<32x128xf32, #tpu.memory_space<vmem>>, vector<32x128xf32>
    %cst_98 = arith.constant dense<0.000000e+00> : vector<1x128xf32>
    %129 = tpu.matmul %127, %128, %cst_98 {dimension_numbers = #tpu.dot_dimension_numbers<[1], [0], [0], [1], [0, 0, 1, 1], [], []>} : vector<1x32xf32>, vector<32x128xf32>, vector<1x128xf32> -> vector<1x128xf32>
    %c0_99 = arith.constant 0 : index
    %c0_100 = arith.constant 0 : index
    %130 = vector.load %arg11[%c0_99, %c0_100] : memref<1x128xf32, #tpu.memory_space<vmem>>, vector<1x128xf32>
    %131 = arith.addf %129, %130 : vector<1x128xf32>
    %c0_101 = arith.constant 0 : index
    %c0_102 = arith.constant 0 : index
    %c0_103 = arith.constant 0 : index
    %132 = vector.load %arg12[%c0_101, %c0_102, %c0_103] : memref<1x1x128xf32, #tpu.memory_space<vmem>>, vector<1x1x128xf32>
    %133 = vector.shape_cast %132 : vector<1x1x128xf32> to vector<1x128xf32>
    %134 = vector.shape_cast %131 : vector<1x128xf32> to vector<1x1x128xf32>
    tpu.vector_store %arg12[%c0_101, %c0_102, %c0_103], %134 {strides = array<i32>} : memref<1x1x128xf32, #tpu.memory_space<vmem>>, vector<1x1x128xf32>,
    return
  }
  func.func @transform_0(%arg0: i32) -> (i32, i32) {
    %c0_i32 = arith.constant 0 : i32
    %c0_i32_0 = arith.constant 0 : i32
    return %arg0, %c0_i32 : i32, i32
  }
  func.func @transform_1(%arg0: i32) -> (i32, i32, i32) {
    %c0_i32 = arith.constant 0 : i32
    %c0_i32_0 = arith.constant 0 : i32
    %c0_i32_1 = arith.constant 0 : i32
    %c0_i32_2 = arith.constant 0 : i32
    return %c0_i32, %c0_i32_0, %c0_i32_1 : i32, i32, i32
  }
  func.func @transform_2(%arg0: i32) -> (i32, i32, i32) {
    %c0_i32 = arith.constant 0 : i32
    %c0_i32_0 = arith.constant 0 : i32
    %c0_i32_1 = arith.constant 0 : i32
    %c0_i32_2 = arith.constant 0 : i32
    return %c0_i32, %c0_i32_0, %c0_i32_1 : i32, i32, i32
  }
  func.func @transform_3(%arg0: i32) -> (i32, i32) {
    %c0_i32 = arith.constant 0 : i32
    %c0_i32_0 = arith.constant 0 : i32
    %c0_i32_1 = arith.constant 0 : i32
    return %c0_i32, %c0_i32_0 : i32, i32
  }
  func.func @transform_4(%arg0: i32) -> (i32, i32, i32) {
    %c0_i32 = arith.constant 0 : i32
    %c0_i32_0 = arith.constant 0 : i32
    %c0_i32_1 = arith.constant 0 : i32
    %c0_i32_2 = arith.constant 0 : i32
    return %c0_i32, %c0_i32_0, %c0_i32_1 : i32, i32, i32
  }
  func.func @transform_5(%arg0: i32) -> (i32, i32, i32) {
    %c0_i32 = arith.constant 0 : i32
    %c0_i32_0 = arith.constant 0 : i32
    %c0_i32_1 = arith.constant 0 : i32
    %c0_i32_2 = arith.constant 0 : i32
    return %c0_i32, %c0_i32_0, %c0_i32_1 : i32, i32, i32
  }
  func.func @transform_6(%arg0: i32) -> (i32, i32) {
    %c0_i32 = arith.constant 0 : i32
    %c0_i32_0 = arith.constant 0 : i32
    %c0_i32_1 = arith.constant 0 : i32
    return %c0_i32, %c0_i32_0 : i32, i32
  }
  func.func @transform_7(%arg0: i32) -> (i32, i32) {
    %c0_i32 = arith.constant 0 : i32
    %c0_i32_0 = arith.constant 0 : i32
    %c0_i32_1 = arith.constant 0 : i32
    return %c0_i32, %c0_i32_0 : i32, i32
  }
  func.func @transform_8(%arg0: i32) -> (i32, i32) {
    %c0_i32 = arith.constant 0 : i32
    %c0_i32_0 = arith.constant 0 : i32
    %c0_i32_1 = arith.constant 0 : i32
    return %c0_i32, %c0_i32_0 : i32, i32
  }
  func.func @transform_9(%arg0: i32) -> (i32, i32) {
    %c0_i32 = arith.constant 0 : i32
    %c0_i32_0 = arith.constant 0 : i32
    %c0_i32_1 = arith.constant 0 : i32
    return %c0_i32, %c0_i32_0 : i32, i32
  }
  func.func @transform_10(%arg0: i32) -> (i32, i32) {
    %c0_i32 = arith.constant 0 : i32
    %c0_i32_0 = arith.constant 0 : i32
    %c0_i32_1 = arith.constant 0 : i32
    return %c0_i32, %c0_i32_0 : i32, i32
  }
  func.func @transform_11(%arg0: i32) -> (i32, i32, i32) {
    %c0_i32 = arith.constant 0 : i32
    %c0_i32_0 = arith.constant 0 : i32
    %c0_i32_1 = arith.constant 0 : i32
    return %arg0, %c0_i32, %c0_i32_0 : i32, i32, i32
  }
}

</mosaic_0001>

<llo_original>
// kernel: tpu_custom_call.1
$region0: #{tpu_custom_call.1}
  #allocation0 [shape = 'u32[]', space=smem, size = 0x4, offset = 0x4, fixed_abs, tag = 'smem constant byte address 0x4 - core index']
  #allocation1 [shape = 'u32[144,128]{1,0:T(1,128)}', space=vmem, size = 0x12000, scoped, tag = 'internal scratch']
  #allocation2 [shape = 'f32[16,128]{1,0:T(8,128)}', space=vmem, size = 0x2000, scoped, tag = 'scratch operand']
  #allocation3 [shape = 'f32[8,128]{1,0:T(8,128)}', space=vmem, size = 0x1000, scoped, tag = 'scratch operand']
  #allocation4 [shape = 'f32[4,64]{1,0:T(4,128)}', space=vmem, size = 0x800, scoped, tag = 'scratch operand']
  #allocation5 [shape = 'f32[1,256]{1,0:T(1,128)}', space=vmem, size = 0x400, scoped, tag = 'scratch operand']
  %s0 = inlined_call_operand.vmem [shape: f32[32,64], index: 0, kind: input, shape index: {}]
  %s1 = inlined_call_operand.vmem [shape: f32[3,64,128], index: 1, kind: input, shape index: {}]
  %s2 = inlined_call_operand.vmem [shape: f32[2,128,64], index: 2, kind: input, shape index: {}]
  %s3 = inlined_call_operand.vmem [shape: f32[1,128], index: 3, kind: input, shape index: {}]
  %s4 = inlined_call_operand.vmem [shape: f32[3,64,128], index: 4, kind: input, shape index: {}]
  %s5 = inlined_call_operand.vmem [shape: f32[2,128,64], index: 5, kind: input, shape index: {}]
  %s6 = inlined_call_operand.vmem [shape: f32[1,128], index: 6, kind: input, shape index: {}]
  %s7 = inlined_call_operand.vmem [shape: f32[256,32], index: 7, kind: input, shape index: {}]
  %s8 = inlined_call_operand.vmem [shape: f32[1,32], index: 8, kind: input, shape index: {}]
  %s9 = inlined_call_operand.vmem [shape: f32[32,128], index: 9, kind: input, shape index: {}]
  %s10 = inlined_call_operand.vmem [shape: f32[1,128], index: 10, kind: input, shape index: {}]
  %s11 = inlined_call_operand.hbm [shape: f32[2,1,128], index: 11, kind: output, shape index: {}]
  %s12 = sld [smem:[#allocation0]]
  $region77: #{tpu_custom_call.1} parent=0
    _
  %s14 = ssub.s32 1, %s12
  %s15 = scalar_select 0, %s14, %s12
  $region1: #{tpu_custom_call.1} parent=0
    #allocation6 [shape = 'u8[1024]{0}', space=vmem, size = 0x400, scoped, tag = 'output window, operand 0']
    #allocation7 [shape = 's32[2]{0}', space=sflag, size = 0x8, scoped, tag = 'scoped memory for tpu_custom_call.1']
    %16 = vsyncpa [#allocation7], 0
    %s17 = scalar_lea.sflag [#allocation7], 1
    %18 = vsyncpa %s17, 0
    loop: start=0, step=1, limit=4
    $region2: #{tpu_custom_call.1} parent=1 // loop_pre_header
      _
    $region3: #{tpu_custom_call.1} parent=1 // loop_header
      %s20 = sphi 0, %s24
      %p21 = scmp.ge.s32.totalorder %s20, 4
      %s30 = sphi 0, %s32
      %s33 = sphi 0, %s30
      %s34 = sphi 0, %s33
      %s50 = sphi 0, %s34
      %s54 = sphi 0, %s54
      %s56 = sphi 0, %s54
      %s57 = sphi 0, %s56
      %s71 = sphi 0, %s57
      %s75 = sphi 0, %s75
      %s77 = sphi 0, %s75
      %s78 = sphi 0, %s77
      %s92 = sphi 0, %s78
      %s96 = sphi 0, %s96
      %s98 = sphi 0, %s96
      %s99 = sphi 0, %s98
      %s113 = sphi 0, %s99
      %s117 = sphi 0, %s117
      %s119 = sphi 0, %s117
      %s120 = sphi 0, %s119
      %s134 = sphi 0, %s120
      %s138 = sphi 0, %s138
      %s140 = sphi 0, %s138
      %s141 = sphi 0, %s140
      %s155 = sphi 0, %s141
      %s159 = sphi 0, %s159
      %s161 = sphi 0, %s159
      %s162 = sphi 0, %s161
      %s176 = sphi 0, %s162
      %s180 = sphi 0, %s180
      %s182 = sphi 0, %s180
      %s183 = sphi 0, %s182
      %s197 = sphi 0, %s183
      %s201 = sphi 0, %s201
      %s203 = sphi 0, %s201
      %s204 = sphi 0, %s203
      %s218 = sphi 0, %s204
      %s222 = sphi 0, %s222
      %s224 = sphi 0, %s222
      %s225 = sphi 0, %s224
      %s239 = sphi 0, %s225
      %s243 = sphi 0, %s243
      %s245 = sphi 0, %s243
      %s246 = sphi 0, %s245
      %s260 = sphi 0, %s246
      %s266 = sphi 0, %s268
      %s269 = sphi 0, %s266
      %s270 = sphi 0, %s269
      %s286 = sphi 0, %s270
    $region4: #{tpu_custom_call.1} parent=1 // loop_header_branch
      %23 = sbr.rel (%p21) target = $region8
    $region5: #{tpu_custom_call.1} parent=1 // loop_body
      %s25 = ssub.s32 %s20, 1
      %s26 = ssub.s32 %s20, 2
      %s27 = sadd.s32 %s20, 1
      %s28 = ssub.s32 %s20, %s27
      %p29 = scmp.eq.s32.totalorder %s28, 0
      %s31 = sadd.s32 %s30, 1
      %s32 = scalar_select %p29, %s30, %s31
      %p35 = pneg %p29
      %p36 = scmp.eq.s32.totalorder %s20, 1
      %p37 = por %p35, %p36
      %p38 = scmp.ne.s32.totalorder %s30, %s33
      %p39 = scmp.eq.s32.totalorder %s20, 0
      %p40 = por %p38, %p39
      %p41 = scmp.ne.s32.totalorder %s30, %s33
      %p42 = scmp.eq.s32.totalorder %s25, 1
      %p43 = por %p41, %p42
      %p44 = scmp.ne.s32.totalorder %s33, %s34
      %p45 = scmp.eq.s32.totalorder %s25, 0
      %p46 = por %p44, %p45
      %p47 = scmp.ne.s32.totalorder %s33, %s34
      %p48 = scmp.eq.s32.totalorder %s26, 1
      %p49 = por %p47, %p48
      %p51 = scmp.ne.s32.totalorder %s34, %s50
      %p52 = scmp.eq.s32.totalorder %s26, 0
      %p53 = por %p51, %p52
      %s55 = sadd.s32 %s54, 1
      %p58 = scmp.eq.s32.totalorder %s20, 1
      %p59 = scmp.ne.s32.totalorder %s54, %s56
      %p60 = scmp.eq.s32.totalorder %s20, 0
      %p61 = por %p59, %p60
      %p62 = scmp.ne.s32.totalorder %s54, %s56
      %p63 = scmp.eq.s32.totalorder %s25, 1
      %p64 = por %p62, %p63
      %p65 = scmp.ne.s32.totalorder %s56, %s57
      %p66 = scmp.eq.s32.totalorder %s25, 0
      %p67 = por %p65, %p66
      %p68 = scmp.ne.s32.totalorder %s56, %s57
      %p69 = scmp.eq.s32.totalorder %s26, 1
      %p70 = por %p68, %p69
      %p72 = scmp.ne.s32.totalorder %s57, %s71
      %p73 = scmp.eq.s32.totalorder %s26, 0
      %p74 = por %p72, %p73
      %s76 = sadd.s32 %s75, 1
      %p79 = scmp.eq.s32.totalorder %s20, 1
      %p80 = scmp.ne.s32.totalorder %s75, %s77
      %p81 = scmp.eq.s32.totalorder %s20, 0
      %p82 = por %p80, %p81
      %p83 = scmp.ne.s32.totalorder %s75, %s77
      %p84 = scmp.eq.s32.totalorder %s25, 1
      %p85 = por %p83, %p84
      %p86 = scmp.ne.s32.totalorder %s77, %s78
      %p87 = scmp.eq.s32.totalorder %s25, 0
      %p88 = por %p86, %p87
      %p89 = scmp.ne.s32.totalorder %s77, %s78
      %p90 = scmp.eq.s32.totalorder %s26, 1
      %p91 = por %p89, %p90
      %p93 = scmp.ne.s32.totalorder %s78, %s92
      %p94 = scmp.eq.s32.totalorder %s26, 0
      %p95 = por %p93, %p94
      %s97 = sadd.s32 %s96, 1
      %p100 = scmp.eq.s32.totalorder %s20, 1
      %p101 = scmp.ne.s32.totalorder %s96, %s98
      %p102 = scmp.eq.s32.totalorder %s20, 0
      %p103 = por %p101, %p102
      %p104 = scmp.ne.s32.totalorder %s96, %s98
      %p105 = scmp.eq.s32.totalorder %s25, 1
      %p106 = por %p104, %p105
      %p107 = scmp.ne.s32.totalorder %s98, %s99
      %p108 = scmp.eq.s32.totalorder %s25, 0
      %p109 = por %p107, %p108
      %p110 = scmp.ne.s32.totalorder %s98, %s99
      %p111 = scmp.eq.s32.totalorder %s26, 1
      %p112 = por %p110, %p111
      %p114 = scmp.ne.s32.totalorder %s99, %s113
      %p115 = scmp.eq.s32.totalorder %s26, 0
      %p116 = por %p114, %p115
      %s118 = sadd.s32 %s117, 1
      %p121 = scmp.eq.s32.totalorder %s20, 1
      %p122 = scmp.ne.s32.totalorder %s117, %s119
      %p123 = scmp.eq.s32.totalorder %s20, 0
      %p124 = por %p122, %p123
      %p125 = scmp.ne.s32.totalorder %s117, %s119
      %p126 = scmp.eq.s32.totalorder %s25, 1
      %p127 = por %p125, %p126
      %p128 = scmp.ne.s32.totalorder %s119, %s120
      %p129 = scmp.eq.s32.totalorder %s25, 0
      %p130 = por %p128, %p129
      %p131 = scmp.ne.s32.totalorder %s119, %s120
      %p132 = scmp.eq.s32.totalorder %s26, 1
      %p133 = por %p131, %p132
      %p135 = scmp.ne.s32.totalorder %s120, %s134
      %p136 = scmp.eq.s32.totalorder %s26, 0
      %p137 = por %p135, %p136
      %s139 = sadd.s32 %s138, 1
      %p142 = scmp.eq.s32.totalorder %s20, 1
      %p143 = scmp.ne.s32.totalorder %s138, %s140
      %p144 = scmp.eq.s32.totalorder %s20, 0
      %p145 = por %p143, %p144
      %p146 = scmp.ne.s32.totalorder %s138, %s140
      %p147 = scmp.eq.s32.totalorder %s25, 1
      %p148 = por %p146, %p147
      %p149 = scmp.ne.s32.totalorder %s140, %s141
      %p150 = scmp.eq.s32.totalorder %s25, 0
      %p151 = por %p149, %p150
      %p152 = scmp.ne.s32.totalorder %s140, %s141
      %p153 = scmp.eq.s32.totalorder %s26, 1
      %p154 = por %p152, %p153
      %p156 = scmp.ne.s32.totalorder %s141, %s155
      %p157 = scmp.eq.s32.totalorder %s26, 0
      %p158 = por %p156, %p157
      %s160 = sadd.s32 %s159, 1
      %p163 = scmp.eq.s32.totalorder %s20, 1
      %p164 = scmp.ne.s32.totalorder %s159, %s161
      %p165 = scmp.eq.s32.totalorder %s20, 0
      %p166 = por %p164, %p165
      %p167 = scmp.ne.s32.totalorder %s159, %s161
      %p168 = scmp.eq.s32.totalorder %s25, 1
      %p169 = por %p167, %p168
      %p170 = scmp.ne.s32.totalorder %s161, %s162
      %p171 = scmp.eq.s32.totalorder %s25, 0
      %p172 = por %p170, %p171
      %p173 = scmp.ne.s32.totalorder %s161, %s162
      %p174 = scmp.eq.s32.totalorder %s26, 1
      %p175 = por %p173, %p174
      %p177 = scmp.ne.s32.totalorder %s162, %s176
      %p178 = scmp.eq.s32.totalorder %s26, 0
      %p179 = por %p177, %p178
      %s181 = sadd.s32 %s180, 1
      %p184 = scmp.eq.s32.totalorder %s20, 1
      %p185 = scmp.ne.s32.totalorder %s180, %s182
      %p186 = scmp.eq.s32.totalorder %s20, 0
      %p187 = por %p185, %p186
      %p188 = scmp.ne.s32.totalorder %s180, %s182
      %p189 = scmp.eq.s32.totalorder %s25, 1
      %p190 = por %p188, %p189
      %p191 = scmp.ne.s32.totalorder %s182, %s183
      %p192 = scmp.eq.s32.totalorder %s25, 0
      %p193 = por %p191, %p192
      %p194 = scmp.ne.s32.totalorder %s182, %s183
      %p195 = scmp.eq.s32.totalorder %s26, 1
      %p196 = por %p194, %p195
      %p198 = scmp.ne.s32.totalorder %s183, %s197
      %p199 = scmp.eq.s32.totalorder %s26, 0
      %p200 = por %p198, %p199
      %s202 = sadd.s32 %s201, 1
      %p205 = scmp.eq.s32.totalorder %s20, 1
      %p206 = scmp.ne.s32.totalorder %s201, %s203
      %p207 = scmp.eq.s32.totalorder %s20, 0
      %p208 = por %p206, %p207
      %p209 = scmp.ne.s32.totalorder %s201, %s203
      %p210 = scmp.eq.s32.totalorder %s25, 1
      %p211 = por %p209, %p210
      %p212 = scmp.ne.s32.totalorder %s203, %s204
      %p213 = scmp.eq.s32.totalorder %s25, 0
      %p214 = por %p212, %p213
      %p215 = scmp.ne.s32.totalorder %s203, %s204
      %p216 = scmp.eq.s32.totalorder %s26, 1
      %p217 = por %p215, %p216
      %p219 = scmp.ne.s32.totalorder %s204, %s218
      %p220 = scmp.eq.s32.totalorder %s26, 0
      %p221 = por %p219, %p220
      %s223 = sadd.s32 %s222, 1
      %p226 = scmp.eq.s32.totalorder %s20, 1
      %p227 = scmp.ne.s32.totalorder %s222, %s224
      %p228 = scmp.eq.s32.totalorder %s20, 0
      %p229 = por %p227, %p228
      %p230 = scmp.ne.s32.totalorder %s222, %s224
      %p231 = scmp.eq.s32.totalorder %s25, 1
      %p232 = por %p230, %p231
      %p233 = scmp.ne.s32.totalorder %s224, %s225
      %p234 = scmp.eq.s32.totalorder %s25, 0
      %p235 = por %p233, %p234
      %p236 = scmp.ne.s32.totalorder %s224, %s225
      %p237 = scmp.eq.s32.totalorder %s26, 1
      %p238 = por %p236, %p237
      %p240 = scmp.ne.s32.totalorder %s225, %s239
      %p241 = scmp.eq.s32.totalorder %s26, 0
      %p242 = por %p240, %p241
      %s244 = sadd.s32 %s243, 1
      %p247 = scmp.eq.s32.totalorder %s20, 1
      %p248 = scmp.ne.s32.totalorder %s243, %s245
      %p249 = scmp.eq.s32.totalorder %s20, 0
      %p250 = por %p248, %p249
      %p251 = scmp.ne.s32.totalorder %s243, %s245
      %p252 = scmp.eq.s32.totalorder %s25, 1
      %p253 = por %p251, %p252
      %p254 = scmp.ne.s32.totalorder %s245, %s246
      %p255 = scmp.eq.s32.totalorder %s25, 0
      %p256 = por %p254, %p255
      %p257 = scmp.ne.s32.totalorder %s245, %s246
      %p258 = scmp.eq.s32.totalorder %s26, 1
      %p259 = por %p257, %p258
      %p261 = scmp.ne.s32.totalorder %s246, %s260
      %p262 = scmp.eq.s32.totalorder %s26, 0
      %p263 = por %p261, %p262
      %s264 = ssub.s32 %s20, %s27
      %p265 = scmp.eq.s32.totalorder %s264, 0
      %s267 = sadd.s32 %s266, 1
      %s268 = scalar_select %p265, %s266, %s267
      %p271 = pneg %p265
      %p272 = scmp.eq.s32.totalorder %s20, 1
      %p273 = por %p271, %p272
      %p274 = scmp.ne.s32.totalorder %s266, %s269
      %p275 = scmp.eq.s32.totalorder %s20, 0
      %p276 = por %p274, %p275
      %p277 = scmp.ne.s32.totalorder %s266, %s269
      %p278 = scmp.eq.s32.totalorder %s25, 1
      %p279 = por %p277, %p278
      %p280 = scmp.ne.s32.totalorder %s269, %s270
      %p281 = scmp.eq.s32.totalorder %s25, 0
      %p282 = por %p280, %p281
      %p283 = scmp.ne.s32.totalorder %s269, %s270
      %p284 = scmp.eq.s32.totalorder %s26, 1
      %p285 = por %p283, %p284
      %p287 = scmp.ne.s32.totalorder %s270, %s286
      %p288 = scmp.eq.s32.totalorder %s26, 0
      %p289 = por %p287, %p288
      %p290 = scmp.le.s32.totalorder 1, %s20
      %p291 = scmp.lt.s32.totalorder %s20, 3
      %p292 = pnand %p290, %p291
      %p293 = pneg %p292
      // Predicated region
      $region9: #{tpu_custom_call.1} parent=5 // pred_check
        _
      $region10: #{tpu_custom_call.1} parent=5 // pred_check_branch
        %295 = sbr.rel (%p292) target = $region12
      $region11: #{tpu_custom_call.1} parent=5 // pred_region
        %s296 = ssub.s32 %s20, 1
        // Predicated region
        $region13: #{tpu_custom_call.1} parent=11 // pred_check
          %p297 = pneg %p67
        $region14: #{tpu_custom_call.1} parent=11 // pred_check_branch
          %299 = sbr.rel (%p297) target = $region16
        $region15: #{tpu_custom_call.1} parent=11 // pred_region
          _
        $region16: #{tpu_custom_call.1} parent=11 // pred_fallthru
          _
        // Predicated region
        $region17: #{tpu_custom_call.1} parent=11 // pred_check
          %p300 = pneg %p88
        $region18: #{tpu_custom_call.1} parent=11 // pred_check_branch
          %302 = sbr.rel (%p300) target = $region20
        $region19: #{tpu_custom_call.1} parent=11 // pred_region
          _
        $region20: #{tpu_custom_call.1} parent=11 // pred_fallthru
          _
        // Predicated region
        $region21: #{tpu_custom_call.1} parent=11 // pred_check
          %p303 = pneg %p109
        $region22: #{tpu_custom_call.1} parent=11 // pred_check_branch
          %305 = sbr.rel (%p303) target = $region24
        $region23: #{tpu_custom_call.1} parent=11 // pred_region
          _
        $region24: #{tpu_custom_call.1} parent=11 // pred_fallthru
          _
        // Predicated region
        $region25: #{tpu_custom_call.1} parent=11 // pred_check
          %p306 = pneg %p130
        $region26: #{tpu_custom_call.1} parent=11 // pred_check_branch
          %308 = sbr.rel (%p306) target = $region28
        $region27: #{tpu_custom_call.1} parent=11 // pred_region
          _
        $region28: #{tpu_custom_call.1} parent=11 // pred_fallthru
          _
        // Predicated region
        $region29: #{tpu_custom_call.1} parent=11 // pred_check
          %p309 = pneg %p151
        $region30: #{tpu_custom_call.1} parent=11 // pred_check_branch
          %311 = sbr.rel (%p309) target = $region32
        $region31: #{tpu_custom_call.1} parent=11 // pred_region
          _
        $region32: #{tpu_custom_call.1} parent=11 // pred_fallthru
          _
        // Predicated region
        $region33: #{tpu_custom_call.1} parent=11 // pred_check
          %p312 = pneg %p172
        $region34: #{tpu_custom_call.1} parent=11 // pred_check_branch
          %314 = sbr.rel (%p312) target = $region36
        $region35: #{tpu_custom_call.1} parent=11 // pred_region
          _
        $region36: #{tpu_custom_call.1} parent=11 // pred_fallthru
          _
        // Predicated region
        $region37: #{tpu_custom_call.1} parent=11 // pred_check
          %p315 = pneg %p193
        $region38: #{tpu_custom_call.1} parent=11 // pred_check_branch
          %317 = sbr.rel (%p315) target = $region40
        $region39: #{tpu_custom_call.1} parent=11 // pred_region
          _
        $region40: #{tpu_custom_call.1} parent=11 // pred_fallthru
          _
        // Predicated region
        $region41: #{tpu_custom_call.1} parent=11 // pred_check
          %p318 = pneg %p214
        $region42: #{tpu_custom_call.1} parent=11 // pred_check_branch
          %320 = sbr.rel (%p318) target = $region44
        $region43: #{tpu_custom_call.1} parent=11 // pred_region
          _
        $region44: #{tpu_custom_call.1} parent=11 // pred_fallthru
          _
        // Predicated region
        $region45: #{tpu_custom_call.1} parent=11 // pred_check
          %p321 = pneg %p235
        $region46: #{tpu_custom_call.1} parent=11 // pred_check_branch
          %323 = sbr.rel (%p321) target = $region48
        $region47: #{tpu_custom_call.1} parent=11 // pred_region
          _
        $region48: #{tpu_custom_call.1} parent=11 // pred_fallthru
          _
        // Predicated region
        $region49: #{tpu_custom_call.1} parent=11 // pred_check
          %p324 = pneg %p256
        $region50: #{tpu_custom_call.1} parent=11 // pred_check_branch
          %326 = sbr.rel (%p324) target = $region52
        $region51: #{tpu_custom_call.1} parent=11 // pred_region
          _
        $region52: #{tpu_custom_call.1} parent=11 // pred_fallthru
          _
      $region12: #{tpu_custom_call.1} parent=5 // pred_fallthru
        _
      %p327 = scmp.lt.s32.totalorder %s20, 2
      // Predicated region
      $region53: #{tpu_custom_call.1} parent=5 // pred_check
        %p328 = pneg %p327
      $region54: #{tpu_custom_call.1} parent=5 // pred_check_branch
        %330 = sbr.rel (%p328) target = $region56
      $region55: #{tpu_custom_call.1} parent=5 // pred_region
        // Predicated region
        $region57: #{tpu_custom_call.1} parent=55 // pred_check
          %p331 = pneg %p40
        $region58: #{tpu_custom_call.1} parent=55 // pred_check_branch
          %333 = sbr.rel (%p331) target = $region60
        $region59: #{tpu_custom_call.1} parent=55 // pred_region
          %s334 = smul.u32 2, %s20
          %p335 = scmp.lt.s32.totalorder %s334, 3
          %s336 = scalar_select %p335, %s334, 3
          %s337 = smul.addr %s336, 8
          %s338 = scalar_lea.vmem %s0, %s337
          %s339 = smul.u32 2, %s20
        $region60: #{tpu_custom_call.1} parent=55 // pred_fallthru
          _
      $region56: #{tpu_custom_call.1} parent=5 // pred_fallthru
        _
      %p340 = scmp.le.s32.totalorder 1, %s20
      %p341 = scmp.lt.s32.totalorder %s20, 3
      %p342 = pnand %p340, %p341
      %p343 = pneg %p342
      // Predicated region
      $region61: #{tpu_custom_call.1} parent=5 // pred_check
        _
      $region62: #{tpu_custom_call.1} parent=5 // pred_check_branch
        %345 = sbr.rel (%p342) target = $region64
      $region63: #{tpu_custom_call.1} parent=5 // pred_region
        %s346 = ssub.s32 %s20, 1
        %s347 = smul.u32 2, %s25
        %p348 = scmp.lt.s32.totalorder %s347, 3
        %s349 = scalar_select %p348, %s347, 3
        %s350 = smul.addr %s349, 8
        %s351 = scalar_lea.vmem %s0, %s350
        %p352 = pneg %p46
        %p353 = pneg %p43
        %p354 = pneg %p67
        %p355 = pneg %p64
        %p356 = pneg %p88
        %p357 = pneg %p85
        %p358 = pneg %p109
        %p359 = pneg %p106
        %p360 = pneg %p130
        %p361 = pneg %p127
        %p362 = pneg %p151
        %p363 = pneg %p148
        %p364 = pneg %p172
        %p365 = pneg %p169
        %p366 = pneg %p193
        %p367 = pneg %p190
        %p368 = pneg %p214
        %p369 = pneg %p211
        %p370 = pneg %p235
        %p371 = pneg %p232
        %p372 = pneg %p256
        %p373 = pneg %p253
        %p374 = pneg %p282
        %p375 = pneg %p279
        %s376 = sand.u32 %s269, 1
        %s377 = scalar_lea.sflag [#allocation7], %s376
        %s378 = sand.u32 %s269, 1
        %s379 = scalar_lea.vmem [#allocation6], %s378
        %s380 = smul.u32 2, %s25
        %p381 = scmp.lt.s32.totalorder %s380, 3
        %s382 = scalar_select %p381, %s380, 3
        %s383 = smul.addr %s382, 8
        %s384 = scalar_lea.vmem %s0, %s383
        %s385 = smul.u32 2, %s25
        %v386 = vld [vmem:[%s384] sm:$0xff]
        %v387 = vld [vmem:[%s384 + $0x8] sm:$0xff]
        %v388 = vlaneseq
        %v389 = vshrl.u32 %v388, 7
        %v390 = vadd.s32 %v389, 8
        %vm391 = vcmp.lt.s32.totalorder %v389, 0
        %v392 = vsub.s32 0, %v389
        %v393 = vsel %vm391, %v392, %v389
        %v394 = vshrl.u32 %v393, 4
        %v395 = vand.u32 %v393, 15
        %v396 = vsub.s32 0, %v395
        %v397 = vsel %vm391, %v396, %v395
        %vm398 = vcmp.lt.s32.totalorder %v390, 0
        %v399 = vsub.s32 0, %v390
        %v400 = vsel %vm398, %v399, %v390
        %v401 = vshrl.u32 %v400, 4
        %v402 = vand.u32 %v400, 15
        %v403 = vsub.s32 0, %v402
        %v404 = vsel %vm398, %v403, %v402
        %vm405 = vcmp.ne.s32.totalorder %v397, 0
        %vm406 = vcmp.ne.s32.totalorder %v404, 0
        %vm407 = vcmp.lt.s32.totalorder %v397, 0
        %vm408 = vcmp.lt.s32.totalorder %v404, 0
        %vm409 = vmand %vm407, %vm405
        %vm410 = vmand %vm408, %vm406
        %v411 = vadd.s32 %v397, 16
        %v412 = vadd.s32 %v404, 16
        %v413 = vsel %vm409, %v411, %v397
        %v414 = vsel %vm410, %v412, %v404
        %vm415 = vcmp.ne.s32.totalorder %v413, 0
        %vm416 = vcmp.ne.s32.totalorder %v414, 0
        %v417 = vrot.slane %v386, 7
        %v418 = vrot.slane %v387, 7
        %vm419 = vcmp.lt.s32.totalorder %v389, 1
        %v420 = vsel %vm419, %v417, %v418
        %v421 = vsel %vm419, %v418, %v417
        %v422 = vsel %vm415, %v421, 0.0
        %v423 = vsel %vm416, %v420, 0.0
        %vm424 = vcmp.ne.s32.totalorder %v413, 15
        %vm425 = vcmp.ne.s32.totalorder %v414, 15
        %v426 = vrot.slane %v386, 1
        %v427 = vrot.slane %v387, 1
        %vm428 = vcmp.lt.s32.totalorder %v389, 7
        %v429 = vsel %vm428, %v426, %v427
        %v430 = vsel %vm428, %v427, %v426
        %v431 = vsel %vm424, %v429, 0.0
        %v432 = vsel %vm425, %v430, 0.0
        %s433 = scalar_lea.vmem %s1, 64
        %v434 = vld [vmem:[%s433] sm:$0xff]
        %v435 = vld [vmem:[%s433 + $0x8] sm:$0xff]
        %v436 = vld [vmem:[%s433 + $0x10] sm:$0xff]
        %v437 = vld [vmem:[%s433 + $0x18] sm:$0xff]
        %v438 = vld [vmem:[%s433 + $0x20] sm:$0xff]
        %v439 = vld [vmem:[%s433 + $0x28] sm:$0xff]
        %v440 = vld [vmem:[%s433 + $0x30] sm:$0xff]
        %v441 = vld [vmem:[%s433 + $0x38] sm:$0xff]
        %v442 = vld [vmem:[%s1] sm:$0xff]
        %v443 = vld [vmem:[%s1 + $0x8] sm:$0xff]
        %v444 = vld [vmem:[%s1 + $0x10] sm:$0xff]
        %v445 = vld [vmem:[%s1 + $0x18] sm:$0xff]
        %v446 = vld [vmem:[%s1 + $0x20] sm:$0xff]
        %v447 = vld [vmem:[%s1 + $0x28] sm:$0xff]
        %v448 = vld [vmem:[%s1 + $0x30] sm:$0xff]
        %v449 = vld [vmem:[%s1 + $0x38] sm:$0xff]
        %vm450 = vcmask 523264
        %v452 = vsel %vm450, %v422, 0
        %v455 = vsel %vm450, %v423, 0
        %457 = vmatprep.subr.mxu0 0.0
        %458 = vmatpush1.msra.mxu0 0.0
        %459 = vmatprep.subr.mxu0 0.0
        %460 = vmatpush1.msra.mxu0 0.0
        %461 = vmatprep.subr.mxu0 0.0
        %462 = vmatpush1.msra.mxu0 0.0
        %463 = vmatprep.subr.mxu0 0.0
        %464 = vmatpush1.msra.mxu0 0.0
        %465 = vmatprep.subr.mxu0 0.0
        %466 = vmatpush1.msra.mxu0 0.0
        %467 = vmatprep.subr.mxu0 0.0
        %468 = vmatpush1.msra.mxu0 0.0
        %469 = vmatprep.subr.mxu0 0.0
        %470 = vmatpush1.msra.mxu0 0.0
        %471 = vmatprep.subr.mxu0 0.0
        %472 = vmatpush1.msra.mxu0 0.0
        %473 = vmatprep.subr.mxu0 0.0
        %474 = vmatpush1.msra.mxu0 %v449
        %475 = vmatprep.subr.mxu0 0.0
        %476 = vmatpush1.msra.mxu0 %v448
        %477 = vmatprep.subr.mxu0 0.0
        %478 = vmatpush1.msra.mxu0 %v447
        %479 = vmatprep.subr.mxu0 0.0
        %480 = vmatpush1.msra.mxu0 %v446
        %481 = vmatprep.subr.mxu0 0.0
        %482 = vmatpush1.msra.mxu0 %v445
        %483 = vmatprep.subr.mxu0 0.0
        %484 = vmatpush1.msra.mxu0 %v444
        %485 = vmatprep.subr.mxu0 0.0
        %486 = vmatpush1.msra.mxu0 %v443
        %487 = vmatprep.subr.mxu0 0.0
        %488 = vmatpush1.msra.mxu0 %v442
        %489 = vmatprep.subr.mxu0 0.0
        %490 = vmatpush2.msra.mxu0 0.0
        %491 = vmatprep.subr.mxu0 0.0
        %492 = vmatpush2.msra.mxu0 0.0
        %493 = vmatprep.subr.mxu0 0.0
        %494 = vmatpush2.msra.mxu0 0.0
        %495 = vmatprep.subr.mxu0 0.0
        %496 = vmatpush2.msra.mxu0 0.0
        %497 = vmatprep.subr.mxu0 0.0
        %498 = vmatpush2.msra.mxu0 0.0
        %499 = vmatprep.subr.mxu0 0.0
        %500 = vmatpush2.msra.mxu0 0.0
        %501 = vmatprep.subr.mxu0 0.0
        %502 = vmatpush2.msra.mxu0 0.0
        %503 = vmatprep.subr.mxu0 0.0
        %504 = vmatpush2.msra.mxu0 0.0
        %505 = vmatprep.subr.mxu0 0.0
        %506 = vmatpush2.msra.mxu0 0.0
        %507 = vmatprep.subr.mxu0 0.0
        %508 = vmatpush2.msra.mxu0 0.0
        %509 = vmatprep.subr.mxu0 0.0
        %510 = vmatpush2.msra.mxu0 0.0
        %511 = vmatprep.subr.mxu0 0.0
        %512 = vmatpush2.msra.mxu0 0.0
        %513 = vmatprep.subr.mxu0 0.0
        %514 = vmatpush2.msra.mxu0 0.0
        %515 = vmatprep.subr.mxu0 0.0
        %516 = vmatpush2.msra.mxu0 0.0
        %517 = vmatprep.subr.mxu0 0.0
        %518 = vmatpush2.msra.mxu0 0.0
        %519 = vmatprep.subr.mxu0 0.0
        %520 = vmatpush2.msra.mxu0 0.0
        %521 = vmatprep.mubr.f32.mxu0 0.0
        %522 = vmatmul.mubr.f32.gmra.mxu0 %v452
        %v523 = vpop.f32.mrf.mxu0
        %v524 = vadd.f32 0.0, %v523
        %v525 = vpop.f32.mrf.mxu0
        %526 = vmatprep.mubr.f32.mxu0 0.0
        %527 = vmatmul.mubr.f32.gmra.mxu0 %v455
        %v528 = vpop.f32.mrf.mxu0
        %v529 = vadd.f32 0.0, %v528
        %v530 = vpop.f32.mrf.mxu0
        %531 = vdwg.mxu0
        %v533 = vsel %vm450, %v386, 0
        %v536 = vsel %vm450, %v387, 0
        %538 = vmatprep.subr.mxu0 0.0
        %539 = vmatpush1.msra.mxu0 0.0
        %540 = vmatprep.subr.mxu0 0.0
        %541 = vmatpush1.msra.mxu0 0.0
        %542 = vmatprep.subr.mxu0 0.0
        %543 = vmatpush1.msra.mxu0 0.0
        %544 = vmatprep.subr.mxu0 0.0
        %545 = vmatpush1.msra.mxu0 0.0
        %546 = vmatprep.subr.mxu0 0.0
        %547 = vmatpush1.msra.mxu0 0.0
        %548 = vmatprep.subr.mxu0 0.0
        %549 = vmatpush1.msra.mxu0 0.0
        %550 = vmatprep.subr.mxu0 0.0
        %551 = vmatpush1.msra.mxu0 0.0
        %552 = vmatprep.subr.mxu0 0.0
        %553 = vmatpush1.msra.mxu0 0.0
        %554 = vmatprep.subr.mxu0 0.0
        %555 = vmatpush1.msra.mxu0 %v441
        %556 = vmatprep.subr.mxu0 0.0
        %557 = vmatpush1.msra.mxu0 %v440
        %558 = vmatprep.subr.mxu0 0.0
        %559 = vmatpush1.msra.mxu0 %v439
        %560 = vmatprep.subr.mxu0 0.0
        %561 = vmatpush1.msra.mxu0 %v438
        %562 = vmatprep.subr.mxu0 0.0
        %563 = vmatpush1.msra.mxu0 %v437
        %564 = vmatprep.subr.mxu0 0.0
        %565 = vmatpush1.msra.mxu0 %v436
        %566 = vmatprep.subr.mxu0 0.0
        %567 = vmatpush1.msra.mxu0 %v435
        %568 = vmatprep.subr.mxu0 0.0
        %569 = vmatpush1.msra.mxu0 %v434
        %570 = vmatprep.subr.mxu0 0.0
        %571 = vmatpush2.msra.mxu0 0.0
        %572 = vmatprep.subr.mxu0 0.0
        %573 = vmatpush2.msra.mxu0 0.0
        %574 = vmatprep.subr.mxu0 0.0
        %575 = vmatpush2.msra.mxu0 0.0
        %576 = vmatprep.subr.mxu0 0.0
        %577 = vmatpush2.msra.mxu0 0.0
        %578 = vmatprep.subr.mxu0 0.0
        %579 = vmatpush2.msra.mxu0 0.0
        %580 = vmatprep.subr.mxu0 0.0
        %581 = vmatpush2.msra.mxu0 0.0
        %582 = vmatprep.subr.mxu0 0.0
        %583 = vmatpush2.msra.mxu0 0.0
        %584 = vmatprep.subr.mxu0 0.0
        %585 = vmatpush2.msra.mxu0 0.0
        %586 = vmatprep.subr.mxu0 0.0
        %587 = vmatpush2.msra.mxu0 0.0
        %588 = vmatprep.subr.mxu0 0.0
        %589 = vmatpush2.msra.mxu0 0.0
        %590 = vmatprep.subr.mxu0 0.0
        %591 = vmatpush2.msra.mxu0 0.0
        %592 = vmatprep.subr.mxu0 0.0
        %593 = vmatpush2.msra.mxu0 0.0
        %594 = vmatprep.subr.mxu0 0.0
        %595 = vmatpush2.msra.mxu0 0.0
        %596 = vmatprep.subr.mxu0 0.0
        %597 = vmatpush2.msra.mxu0 0.0
        %598 = vmatprep.subr.mxu0 0.0
        %599 = vmatpush2.msra.mxu0 0.0
        %600 = vmatprep.subr.mxu0 0.0
        %601 = vmatpush2.msra.mxu0 0.0
        %602 = vmatprep.mubr.f32.mxu0 0.0
        %603 = vmatmul.mubr.f32.gmra.mxu0 %v533
        %v604 = vpop.f32.mrf.mxu0
        %v605 = vadd.f32 %v524, %v604
        %v606 = vpop.f32.mrf.mxu0
        %607 = vmatprep.mubr.f32.mxu0 0.0
        %608 = vmatmul.mubr.f32.gmra.mxu0 %v536
        %v609 = vpop.f32.mrf.mxu0
        %v610 = vadd.f32 %v529, %v609
        %v611 = vpop.f32.mrf.mxu0
        %612 = vdwg.mxu0
        %s613 = scalar_lea.vmem %s1, 128
        %v614 = vld [vmem:[%s613] sm:$0xff]
        %v615 = vld [vmem:[%s613 + $0x8] sm:$0xff]
        %v616 = vld [vmem:[%s613 + $0x10] sm:$0xff]
        %v617 = vld [vmem:[%s613 + $0x18] sm:$0xff]
        %v618 = vld [vmem:[%s613 + $0x20] sm:$0xff]
        %v619 = vld [vmem:[%s613 + $0x28] sm:$0xff]
        %v620 = vld [vmem:[%s613 + $0x30] sm:$0xff]
        %v621 = vld [vmem:[%s613 + $0x38] sm:$0xff]
        %v623 = vsel %vm450, %v431, 0
        %v626 = vsel %vm450, %v432, 0
        %628 = vmatprep.subr.mxu0 0.0
        %629 = vmatpush1.msra.mxu0 0.0
        %630 = vmatprep.subr.mxu0 0.0
        %631 = vmatpush1.msra.mxu0 0.0
        %632 = vmatprep.subr.mxu0 0.0
        %633 = vmatpush1.msra.mxu0 0.0
        %634 = vmatprep.subr.mxu0 0.0
        %635 = vmatpush1.msra.mxu0 0.0
        %636 = vmatprep.subr.mxu0 0.0
        %637 = vmatpush1.msra.mxu0 0.0
        %638 = vmatprep.subr.mxu0 0.0
        %639 = vmatpush1.msra.mxu0 0.0
        %640 = vmatprep.subr.mxu0 0.0
        %641 = vmatpush1.msra.mxu0 0.0
        %642 = vmatprep.subr.mxu0 0.0
        %643 = vmatpush1.msra.mxu0 0.0
        %644 = vmatprep.subr.mxu0 0.0
        %645 = vmatpush1.msra.mxu0 %v621
        %646 = vmatprep.subr.mxu0 0.0
        %647 = vmatpush1.msra.mxu0 %v620
        %648 = vmatprep.subr.mxu0 0.0
        %649 = vmatpush1.msra.mxu0 %v619
        %650 = vmatprep.subr.mxu0 0.0
        %651 = vmatpush1.msra.mxu0 %v618
        %652 = vmatprep.subr.mxu0 0.0
        %653 = vmatpush1.msra.mxu0 %v617
        %654 = vmatprep.subr.mxu0 0.0
        %655 = vmatpush1.msra.mxu0 %v616
        %656 = vmatprep.subr.mxu0 0.0
        %657 = vmatpush1.msra.mxu0 %v615
        %658 = vmatprep.subr.mxu0 0.0
        %659 = vmatpush1.msra.mxu0 %v614
        %660 = vmatprep.subr.mxu0 0.0
        %661 = vmatpush2.msra.mxu0 0.0
        %662 = vmatprep.subr.mxu0 0.0
        %663 = vmatpush2.msra.mxu0 0.0
        %664 = vmatprep.subr.mxu0 0.0
        %665 = vmatpush2.msra.mxu0 0.0
        %666 = vmatprep.subr.mxu0 0.0
        %667 = vmatpush2.msra.mxu0 0.0
        %668 = vmatprep.subr.mxu0 0.0
        %669 = vmatpush2.msra.mxu0 0.0
        %670 = vmatprep.subr.mxu0 0.0
        %671 = vmatpush2.msra.mxu0 0.0
        %672 = vmatprep.subr.mxu0 0.0
        %673 = vmatpush2.msra.mxu0 0.0
        %674 = vmatprep.subr.mxu0 0.0
        %675 = vmatpush2.msra.mxu0 0.0
        %676 = vmatprep.subr.mxu0 0.0
        %677 = vmatpush2.msra.mxu0 0.0
        %678 = vmatprep.subr.mxu0 0.0
        %679 = vmatpush2.msra.mxu0 0.0
        %680 = vmatprep.subr.mxu0 0.0
        %681 = vmatpush2.msra.mxu0 0.0
        %682 = vmatprep.subr.mxu0 0.0
        %683 = vmatpush2.msra.mxu0 0.0
        %684 = vmatprep.subr.mxu0 0.0
        %685 = vmatpush2.msra.mxu0 0.0
        %686 = vmatprep.subr.mxu0 0.0
        %687 = vmatpush2.msra.mxu0 0.0
        %688 = vmatprep.subr.mxu0 0.0
        %689 = vmatpush2.msra.mxu0 0.0
        %690 = vmatprep.subr.mxu0 0.0
        %691 = vmatpush2.msra.mxu0 0.0
        %692 = vmatprep.mubr.f32.mxu0 0.0
        %693 = vmatmul.mubr.f32.gmra.mxu0 %v623
        %v694 = vpop.f32.mrf.mxu0
        %v695 = vadd.f32 0.0, %v694
        %v696 = vpop.f32.mrf.mxu0
        %697 = vmatprep.mubr.f32.mxu0 0.0
        %698 = vmatmul.mubr.f32.gmra.mxu0 %v626
        %v699 = vpop.f32.mrf.mxu0
        %v700 = vadd.f32 0.0, %v699
        %v701 = vpop.f32.mrf.mxu0
        %702 = vdwg.mxu0
        %v703 = vadd.f32 %v605, %v695
        %v704 = vadd.f32 %v610, %v700
        %v705 = vld [vmem:[%s3] sm:$0x1]
        %v707 = vlaneseq
        %v708 = vshrl.u32 %v707, 7
        %v709 = vsub.s32 0, %v708
        %v710 = vrot.slane %v705, %v709
        %v712 = vadd.f32 %v703, %v710
        %v713 = vadd.f32 %v704, %v710
        %714 = vst [vmem:[#allocation2] sm:$0xff] %v712
        %715 = vst [vmem:[#allocation2 + $0x8] sm:$0xff] %v713
        %v716 = vld [vmem:[#allocation2] ss:$2 sm:$0xff]
        %s717 = scalar_lea.vmem [#allocation2], 1
        %v718 = vld [vmem:[%s717] ss:$2 sm:$0xff]
        %v719 = vmax.f32 %v716, %v718
        %v720 = vld [vmem:[%s2] sm:$0xff]
        %v721 = vld [vmem:[%s2 + $0x8] sm:$0xff]
        %v722 = vld [vmem:[%s2 + $0x10] sm:$0xff]
        %v723 = vld [vmem:[%s2 + $0x18] sm:$0xff]
        %v724 = vld [vmem:[%s2 + $0x20] sm:$0xff]
        %v725 = vld [vmem:[%s2 + $0x28] sm:$0xff]
        %v726 = vld [vmem:[%s2 + $0x30] sm:$0xff]
        %v727 = vld [vmem:[%s2 + $0x38] sm:$0xff]
        %v728 = vld [vmem:[%s2 + $0x40] sm:$0xff]
        %v729 = vld [vmem:[%s2 + $0x48] sm:$0xff]
        %v730 = vld [vmem:[%s2 + $0x50] sm:$0xff]
        %v731 = vld [vmem:[%s2 + $0x58] sm:$0xff]
        %v732 = vld [vmem:[%s2 + $0x60] sm:$0xff]
        %v733 = vld [vmem:[%s2 + $0x68] sm:$0xff]
        %v734 = vld [vmem:[%s2 + $0x70] sm:$0xff]
        %v735 = vld [vmem:[%s2 + $0x78] sm:$0xff]
        %736 = vmatprep.subr.mxu0 0.0
        %737 = vmatpush1.msra.mxu0 %v735
        %738 = vmatprep.subr.mxu0 0.0
        %739 = vmatpush1.msra.mxu0 %v734
        %740 = vmatprep.subr.mxu0 0.0
        %741 = vmatpush1.msra.mxu0 %v733
        %742 = vmatprep.subr.mxu0 0.0
        %743 = vmatpush1.msra.mxu0 %v732
        %744 = vmatprep.subr.mxu0 0.0
        %745 = vmatpush1.msra.mxu0 %v731
        %746 = vmatprep.subr.mxu0 0.0
        %747 = vmatpush1.msra.mxu0 %v730
        %748 = vmatprep.subr.mxu0 0.0
        %749 = vmatpush1.msra.mxu0 %v729
        %750 = vmatprep.subr.mxu0 0.0
        %751 = vmatpush1.msra.mxu0 %v728
        %752 = vmatprep.subr.mxu0 0.0
        %753 = vmatpush1.msra.mxu0 %v727
        %754 = vmatprep.subr.mxu0 0.0
        %755 = vmatpush1.msra.mxu0 %v726
        %756 = vmatprep.subr.mxu0 0.0
        %757 = vmatpush1.msra.mxu0 %v725
        %758 = vmatprep.subr.mxu0 0.0
        %759 = vmatpush1.msra.mxu0 %v724
        %760 = vmatprep.subr.mxu0 0.0
        %761 = vmatpush1.msra.mxu0 %v723
        %762 = vmatprep.subr.mxu0 0.0
        %763 = vmatpush1.msra.mxu0 %v722
        %764 = vmatprep.subr.mxu0 0.0
        %765 = vmatpush1.msra.mxu0 %v721
        %766 = vmatprep.subr.mxu0 0.0
        %767 = vmatpush1.msra.mxu0 %v720
        %768 = vmatprep.subr.mxu0 0.0
        %769 = vmatpush2.msra.mxu0 0.0
        %770 = vmatprep.subr.mxu0 0.0
        %771 = vmatpush2.msra.mxu0 0.0
        %772 = vmatprep.subr.mxu0 0.0
        %773 = vmatpush2.msra.mxu0 0.0
        %774 = vmatprep.subr.mxu0 0.0
        %775 = vmatpush2.msra.mxu0 0.0
        %776 = vmatprep.subr.mxu0 0.0
        %777 = vmatpush2.msra.mxu0 0.0
        %778 = vmatprep.subr.mxu0 0.0
        %779 = vmatpush2.msra.mxu0 0.0
        %780 = vmatprep.subr.mxu0 0.0
        %781 = vmatpush2.msra.mxu0 0.0
        %782 = vmatprep.subr.mxu0 0.0
        %783 = vmatpush2.msra.mxu0 0.0
        %784 = vmatprep.subr.mxu0 0.0
        %785 = vmatpush2.msra.mxu0 0.0
        %786 = vmatprep.subr.mxu0 0.0
        %787 = vmatpush2.msra.mxu0 0.0
        %788 = vmatprep.subr.mxu0 0.0
        %789 = vmatpush2.msra.mxu0 0.0
        %790 = vmatprep.subr.mxu0 0.0
        %791 = vmatpush2.msra.mxu0 0.0
        %792 = vmatprep.subr.mxu0 0.0
        %793 = vmatpush2.msra.mxu0 0.0
        %794 = vmatprep.subr.mxu0 0.0
        %795 = vmatpush2.msra.mxu0 0.0
        %796 = vmatprep.subr.mxu0 0.0
        %797 = vmatpush2.msra.mxu0 0.0
        %798 = vmatprep.subr.mxu0 0.0
        %799 = vmatpush2.msra.mxu0 0.0
        %800 = vmatprep.mubr.f32.mxu0 0.0
        %801 = vmatmul.mubr.f32.gmra.mxu0 %v719
        %v802 = vpop.f32.mrf.mxu0
        %v803 = vadd.f32 0.0, %v802
        %v804 = vpop.f32.mrf.mxu0
        %805 = vdwg.mxu0
        %s806 = scalar_lea.vmem %s2, 128
        %v807 = vld [vmem:[%s806] sm:$0xff]
        %v808 = vld [vmem:[%s806 + $0x8] sm:$0xff]
        %v809 = vld [vmem:[%s806 + $0x10] sm:$0xff]
        %v810 = vld [vmem:[%s806 + $0x18] sm:$0xff]
        %v811 = vld [vmem:[%s806 + $0x20] sm:$0xff]
        %v812 = vld [vmem:[%s806 + $0x28] sm:$0xff]
        %v813 = vld [vmem:[%s806 + $0x30] sm:$0xff]
        %v814 = vld [vmem:[%s806 + $0x38] sm:$0xff]
        %v815 = vld [vmem:[%s806 + $0x40] sm:$0xff]
        %v816 = vld [vmem:[%s806 + $0x48] sm:$0xff]
        %v817 = vld [vmem:[%s806 + $0x50] sm:$0xff]
        %v818 = vld [vmem:[%s806 + $0x58] sm:$0xff]
        %v819 = vld [vmem:[%s806 + $0x60] sm:$0xff]
        %v820 = vld [vmem:[%s806 + $0x68] sm:$0xff]
        %v821 = vld [vmem:[%s806 + $0x70] sm:$0xff]
        %v822 = vld [vmem:[%s806 + $0x78] sm:$0xff]
        %823 = vmatprep.subr.mxu0 0.0
        %824 = vmatpush1.msra.mxu0 %v822
        %825 = vmatprep.subr.mxu0 0.0
        %826 = vmatpush1.msra.mxu0 %v821
        %827 = vmatprep.subr.mxu0 0.0
        %828 = vmatpush1.msra.mxu0 %v820
        %829 = vmatprep.subr.mxu0 0.0
        %830 = vmatpush1.msra.mxu0 %v819
        %831 = vmatprep.subr.mxu0 0.0
        %832 = vmatpush1.msra.mxu0 %v818
        %833 = vmatprep.subr.mxu0 0.0
        %834 = vmatpush1.msra.mxu0 %v817
        %835 = vmatprep.subr.mxu0 0.0
        %836 = vmatpush1.msra.mxu0 %v816
        %837 = vmatprep.subr.mxu0 0.0
        %838 = vmatpush1.msra.mxu0 %v815
        %839 = vmatprep.subr.mxu0 0.0
        %840 = vmatpush1.msra.mxu0 %v814
        %841 = vmatprep.subr.mxu0 0.0
        %842 = vmatpush1.msra.mxu0 %v813
        %843 = vmatprep.subr.mxu0 0.0
        %844 = vmatpush1.msra.mxu0 %v812
        %845 = vmatprep.subr.mxu0 0.0
        %846 = vmatpush1.msra.mxu0 %v811
        %847 = vmatprep.subr.mxu0 0.0
        %848 = vmatpush1.msra.mxu0 %v810
        %849 = vmatprep.subr.mxu0 0.0
        %850 = vmatpush1.msra.mxu0 %v809
        %851 = vmatprep.subr.mxu0 0.0
        %852 = vmatpush1.msra.mxu0 %v808
        %853 = vmatprep.subr.mxu0 0.0
        %854 = vmatpush1.msra.mxu0 %v807
        %855 = vmatprep.subr.mxu0 0.0
        %856 = vmatpush2.msra.mxu0 0.0
        %857 = vmatprep.subr.mxu0 0.0
        %858 = vmatpush2.msra.mxu0 0.0
        %859 = vmatprep.subr.mxu0 0.0
        %860 = vmatpush2.msra.mxu0 0.0
        %861 = vmatprep.subr.mxu0 0.0
        %862 = vmatpush2.msra.mxu0 0.0
        %863 = vmatprep.subr.mxu0 0.0
        %864 = vmatpush2.msra.mxu0 0.0
        %865 = vmatprep.subr.mxu0 0.0
        %866 = vmatpush2.msra.mxu0 0.0
        %867 = vmatprep.subr.mxu0 0.0
        %868 = vmatpush2.msra.mxu0 0.0
        %869 = vmatprep.subr.mxu0 0.0
        %870 = vmatpush2.msra.mxu0 0.0
        %871 = vmatprep.subr.mxu0 0.0
        %872 = vmatpush2.msra.mxu0 0.0
        %873 = vmatprep.subr.mxu0 0.0
        %874 = vmatpush2.msra.mxu0 0.0
        %875 = vmatprep.subr.mxu0 0.0
        %876 = vmatpush2.msra.mxu0 0.0
        %877 = vmatprep.subr.mxu0 0.0
        %878 = vmatpush2.msra.mxu0 0.0
        %879 = vmatprep.subr.mxu0 0.0
        %880 = vmatpush2.msra.mxu0 0.0
        %881 = vmatprep.subr.mxu0 0.0
        %882 = vmatpush2.msra.mxu0 0.0
        %883 = vmatprep.subr.mxu0 0.0
        %884 = vmatpush2.msra.mxu0 0.0
        %885 = vmatprep.subr.mxu0 0.0
        %886 = vmatpush2.msra.mxu0 0.0
        %887 = vmatprep.mubr.f32.mxu0 0.0
        %888 = vmatmul.mubr.f32.gmra.mxu0 %v719
        %v889 = vpop.f32.mrf.mxu0
        %v890 = vadd.f32 0.0, %v889
        %v891 = vpop.f32.mrf.mxu0
        %892 = vdwg.mxu0
        %v893 = vmax.f32 %v803, %v890
        %v894 = vmul.f32 %v893, 0.1
        %v895 = vmax.f32 %v893, %v894
        %vm896 = vcmp.lt.s32.totalorder %v389, 0
        %v897 = vsub.s32 0, %v389
        %v898 = vsel %vm896, %v897, %v389
        %v899 = vshrl.u32 %v898, 3
        %v900 = vand.u32 %v898, 7
        %v901 = vsub.s32 0, %v900
        %v902 = vsel %vm896, %v901, %v900
        %vm903 = vcmp.ne.s32.totalorder %v902, 0
        %vm904 = vcmp.lt.s32.totalorder %v902, 0
        %vm905 = vmand %vm904, %vm903
        %v906 = vadd.s32 %v902, 8
        %v907 = vsel %vm905, %v906, %v902
        %vm908 = vcmp.ne.s32.totalorder %v907, 0
        %v909 = vrot.slane %v895, 7
        %v910 = vsel %vm908, %v909, 0.0
        %vm911 = vcmp.ne.s32.totalorder %v907, 7
        %v912 = vrot.slane %v895, 1
        %v913 = vsel %vm911, %v912, 0.0
        %s914 = scalar_lea.vmem %s4, 64
        %v915 = vld [vmem:[%s914] sm:$0xff]
        %v916 = vld [vmem:[%s914 + $0x8] sm:$0xff]
        %v917 = vld [vmem:[%s914 + $0x10] sm:$0xff]
        %v918 = vld [vmem:[%s914 + $0x18] sm:$0xff]
        %v919 = vld [vmem:[%s914 + $0x20] sm:$0xff]
        %v920 = vld [vmem:[%s914 + $0x28] sm:$0xff]
        %v921 = vld [vmem:[%s914 + $0x30] sm:$0xff]
        %v922 = vld [vmem:[%s914 + $0x38] sm:$0xff]
        %v923 = vld [vmem:[%s4] sm:$0xff]
        %v924 = vld [vmem:[%s4 + $0x8] sm:$0xff]
        %v925 = vld [vmem:[%s4 + $0x10] sm:$0xff]
        %v926 = vld [vmem:[%s4 + $0x18] sm:$0xff]
        %v927 = vld [vmem:[%s4 + $0x20] sm:$0xff]
        %v928 = vld [vmem:[%s4 + $0x28] sm:$0xff]
        %v929 = vld [vmem:[%s4 + $0x30] sm:$0xff]
        %v930 = vld [vmem:[%s4 + $0x38] sm:$0xff]
        %v932 = vsel %vm450, %v910, 0
        %934 = vmatprep.subr.mxu0 0.0
        %935 = vmatpush1.msra.mxu0 0.0
        %936 = vmatprep.subr.mxu0 0.0
        %937 = vmatpush1.msra.mxu0 0.0
        %938 = vmatprep.subr.mxu0 0.0
        %939 = vmatpush1.msra.mxu0 0.0
        %940 = vmatprep.subr.mxu0 0.0
        %941 = vmatpush1.msra.mxu0 0.0
        %942 = vmatprep.subr.mxu0 0.0
        %943 = vmatpush1.msra.mxu0 0.0
        %944 = vmatprep.subr.mxu0 0.0
        %945 = vmatpush1.msra.mxu0 0.0
        %946 = vmatprep.subr.mxu0 0.0
        %947 = vmatpush1.msra.mxu0 0.0
        %948 = vmatprep.subr.mxu0 0.0
        %949 = vmatpush1.msra.mxu0 0.0
        %950 = vmatprep.subr.mxu0 0.0
        %951 = vmatpush1.msra.mxu0 %v930
        %952 = vmatprep.subr.mxu0 0.0
        %953 = vmatpush1.msra.mxu0 %v929
        %954 = vmatprep.subr.mxu0 0.0
        %955 = vmatpush1.msra.mxu0 %v928
        %956 = vmatprep.subr.mxu0 0.0
        %957 = vmatpush1.msra.mxu0 %v927
        %958 = vmatprep.subr.mxu0 0.0
        %959 = vmatpush1.msra.mxu0 %v926
        %960 = vmatprep.subr.mxu0 0.0
        %961 = vmatpush1.msra.mxu0 %v925
        %962 = vmatprep.subr.mxu0 0.0
        %963 = vmatpush1.msra.mxu0 %v924
        %964 = vmatprep.subr.mxu0 0.0
        %965 = vmatpush1.msra.mxu0 %v923
        %966 = vmatprep.subr.mxu0 0.0
        %967 = vmatpush2.msra.mxu0 0.0
        %968 = vmatprep.subr.mxu0 0.0
        %969 = vmatpush2.msra.mxu0 0.0
        %970 = vmatprep.subr.mxu0 0.0
        %971 = vmatpush2.msra.mxu0 0.0
        %972 = vmatprep.subr.mxu0 0.0
        %973 = vmatpush2.msra.mxu0 0.0
        %974 = vmatprep.subr.mxu0 0.0
        %975 = vmatpush2.msra.mxu0 0.0
        %976 = vmatprep.subr.mxu0 0.0
        %977 = vmatpush2.msra.mxu0 0.0
        %978 = vmatprep.subr.mxu0 0.0
        %979 = vmatpush2.msra.mxu0 0.0
        %980 = vmatprep.subr.mxu0 0.0
        %981 = vmatpush2.msra.mxu0 0.0
        %982 = vmatprep.subr.mxu0 0.0
        %983 = vmatpush2.msra.mxu0 0.0
        %984 = vmatprep.subr.mxu0 0.0
        %985 = vmatpush2.msra.mxu0 0.0
        %986 = vmatprep.subr.mxu0 0.0
        %987 = vmatpush2.msra.mxu0 0.0
        %988 = vmatprep.subr.mxu0 0.0
        %989 = vmatpush2.msra.mxu0 0.0
        %990 = vmatprep.subr.mxu0 0.0
        %991 = vmatpush2.msra.mxu0 0.0
        %992 = vmatprep.subr.mxu0 0.0
        %993 = vmatpush2.msra.mxu0 0.0
        %994 = vmatprep.subr.mxu0 0.0
        %995 = vmatpush2.msra.mxu0 0.0
        %996 = vmatprep.subr.mxu0 0.0
        %997 = vmatpush2.msra.mxu0 0.0
        %998 = vmatprep.mubr.f32.mxu0 0.0
        %999 = vmatmul.mubr.f32.gmra.mxu0 %v932
        %v1000 = vpop.f32.mrf.mxu0
        %v1001 = vadd.f32 0.0, %v1000
        %v1002 = vpop.f32.mrf.mxu0
        %1003 = vdwg.mxu0
        %v1005 = vsel %vm450, %v895, 0
        %1007 = vmatprep.subr.mxu0 0.0
        %1008 = vmatpush1.msra.mxu0 0.0
        %1009 = vmatprep.subr.mxu0 0.0
        %1010 = vmatpush1.msra.mxu0 0.0
        %1011 = vmatprep.subr.mxu0 0.0
        %1012 = vmatpush1.msra.mxu0 0.0
        %1013 = vmatprep.subr.mxu0 0.0
        %1014 = vmatpush1.msra.mxu0 0.0
        %1015 = vmatprep.subr.mxu0 0.0
        %1016 = vmatpush1.msra.mxu0 0.0
        %1017 = vmatprep.subr.mxu0 0.0
        %1018 = vmatpush1.msra.mxu0 0.0
        %1019 = vmatprep.subr.mxu0 0.0
        %1020 = vmatpush1.msra.mxu0 0.0
        %1021 = vmatprep.subr.mxu0 0.0
        %1022 = vmatpush1.msra.mxu0 0.0
        %1023 = vmatprep.subr.mxu0 0.0
        %1024 = vmatpush1.msra.mxu0 %v922
        %1025 = vmatprep.subr.mxu0 0.0
        %1026 = vmatpush1.msra.mxu0 %v921
        %1027 = vmatprep.subr.mxu0 0.0
        %1028 = vmatpush1.msra.mxu0 %v920
        %1029 = vmatprep.subr.mxu0 0.0
        %1030 = vmatpush1.msra.mxu0 %v919
        %1031 = vmatprep.subr.mxu0 0.0
        %1032 = vmatpush1.msra.mxu0 %v918
        %1033 = vmatprep.subr.mxu0 0.0
        %1034 = vmatpush1.msra.mxu0 %v917
        %1035 = vmatprep.subr.mxu0 0.0
        %1036 = vmatpush1.msra.mxu0 %v916
        %1037 = vmatprep.subr.mxu0 0.0
        %1038 = vmatpush1.msra.mxu0 %v915
        %1039 = vmatprep.subr.mxu0 0.0
        %1040 = vmatpush2.msra.mxu0 0.0
        %1041 = vmatprep.subr.mxu0 0.0
        %1042 = vmatpush2.msra.mxu0 0.0
        %1043 = vmatprep.subr.mxu0 0.0
        %1044 = vmatpush2.msra.mxu0 0.0
        %1045 = vmatprep.subr.mxu0 0.0
        %1046 = vmatpush2.msra.mxu0 0.0
        %1047 = vmatprep.subr.mxu0 0.0
        %1048 = vmatpush2.msra.mxu0 0.0
        %1049 = vmatprep.subr.mxu0 0.0
        %1050 = vmatpush2.msra.mxu0 0.0
        %1051 = vmatprep.subr.mxu0 0.0
        %1052 = vmatpush2.msra.mxu0 0.0
        %1053 = vmatprep.subr.mxu0 0.0
        %1054 = vmatpush2.msra.mxu0 0.0
        %1055 = vmatprep.subr.mxu0 0.0
        %1056 = vmatpush2.msra.mxu0 0.0
        %1057 = vmatprep.subr.mxu0 0.0
        %1058 = vmatpush2.msra.mxu0 0.0
        %1059 = vmatprep.subr.mxu0 0.0
        %1060 = vmatpush2.msra.mxu0 0.0
        %1061 = vmatprep.subr.mxu0 0.0
        %1062 = vmatpush2.msra.mxu0 0.0
        %1063 = vmatprep.subr.mxu0 0.0
        %1064 = vmatpush2.msra.mxu0 0.0
        %1065 = vmatprep.subr.mxu0 0.0
        %1066 = vmatpush2.msra.mxu0 0.0
        %1067 = vmatprep.subr.mxu0 0.0
        %1068 = vmatpush2.msra.mxu0 0.0
        %1069 = vmatprep.subr.mxu0 0.0
        %1070 = vmatpush2.msra.mxu0 0.0
        %1071 = vmatprep.mubr.f32.mxu0 0.0
        %1072 = vmatmul.mubr.f32.gmra.mxu0 %v1005
        %v1073 = vpop.f32.mrf.mxu0
        %v1074 = vadd.f32 %v1001, %v1073
        %v1075 = vpop.f32.mrf.mxu0
        %1076 = vdwg.mxu0
        %s1077 = scalar_lea.vmem %s4, 128
        %v1078 = vld [vmem:[%s1077] sm:$0xff]
        %v1079 = vld [vmem:[%s1077 + $0x8] sm:$0xff]
        %v1080 = vld [vmem:[%s1077 + $0x10] sm:$0xff]
        %v1081 = vld [vmem:[%s1077 + $0x18] sm:$0xff]
        %v1082 = vld [vmem:[%s1077 + $0x20] sm:$0xff]
        %v1083 = vld [vmem:[%s1077 + $0x28] sm:$0xff]
        %v1084 = vld [vmem:[%s1077 + $0x30] sm:$0xff]
        %v1085 = vld [vmem:[%s1077 + $0x38] sm:$0xff]
        %v1087 = vsel %vm450, %v913, 0
        %1089 = vmatprep.subr.mxu0 0.0
        %1090 = vmatpush1.msra.mxu0 0.0
        %1091 = vmatprep.subr.mxu0 0.0
        %1092 = vmatpush1.msra.mxu0 0.0
        %1093 = vmatprep.subr.mxu0 0.0
        %1094 = vmatpush1.msra.mxu0 0.0
        %1095 = vmatprep.subr.mxu0 0.0
        %1096 = vmatpush1.msra.mxu0 0.0
        %1097 = vmatprep.subr.mxu0 0.0
        %1098 = vmatpush1.msra.mxu0 0.0
        %1099 = vmatprep.subr.mxu0 0.0
        %1100 = vmatpush1.msra.mxu0 0.0
        %1101 = vmatprep.subr.mxu0 0.0
        %1102 = vmatpush1.msra.mxu0 0.0
        %1103 = vmatprep.subr.mxu0 0.0
        %1104 = vmatpush1.msra.mxu0 0.0
        %1105 = vmatprep.subr.mxu0 0.0
        %1106 = vmatpush1.msra.mxu0 %v1085
        %1107 = vmatprep.subr.mxu0 0.0
        %1108 = vmatpush1.msra.mxu0 %v1084
        %1109 = vmatprep.subr.mxu0 0.0
        %1110 = vmatpush1.msra.mxu0 %v1083
        %1111 = vmatprep.subr.mxu0 0.0
        %1112 = vmatpush1.msra.mxu0 %v1082
        %1113 = vmatprep.subr.mxu0 0.0
        %1114 = vmatpush1.msra.mxu0 %v1081
        %1115 = vmatprep.subr.mxu0 0.0
        %1116 = vmatpush1.msra.mxu0 %v1080
        %1117 = vmatprep.subr.mxu0 0.0
        %1118 = vmatpush1.msra.mxu0 %v1079
        %1119 = vmatprep.subr.mxu0 0.0
        %1120 = vmatpush1.msra.mxu0 %v1078
        %1121 = vmatprep.subr.mxu0 0.0
        %1122 = vmatpush2.msra.mxu0 0.0
        %1123 = vmatprep.subr.mxu0 0.0
        %1124 = vmatpush2.msra.mxu0 0.0
        %1125 = vmatprep.subr.mxu0 0.0
        %1126 = vmatpush2.msra.mxu0 0.0
        %1127 = vmatprep.subr.mxu0 0.0
        %1128 = vmatpush2.msra.mxu0 0.0
        %1129 = vmatprep.subr.mxu0 0.0
        %1130 = vmatpush2.msra.mxu0 0.0
        %1131 = vmatprep.subr.mxu0 0.0
        %1132 = vmatpush2.msra.mxu0 0.0
        %1133 = vmatprep.subr.mxu0 0.0
        %1134 = vmatpush2.msra.mxu0 0.0
        %1135 = vmatprep.subr.mxu0 0.0
        %1136 = vmatpush2.msra.mxu0 0.0
        %1137 = vmatprep.subr.mxu0 0.0
        %1138 = vmatpush2.msra.mxu0 0.0
        %1139 = vmatprep.subr.mxu0 0.0
        %1140 = vmatpush2.msra.mxu0 0.0
        %1141 = vmatprep.subr.mxu0 0.0
        %1142 = vmatpush2.msra.mxu0 0.0
        %1143 = vmatprep.subr.mxu0 0.0
        %1144 = vmatpush2.msra.mxu0 0.0
        %1145 = vmatprep.subr.mxu0 0.0
        %1146 = vmatpush2.msra.mxu0 0.0
        %1147 = vmatprep.subr.mxu0 0.0
        %1148 = vmatpush2.msra.mxu0 0.0
        %1149 = vmatprep.subr.mxu0 0.0
        %1150 = vmatpush2.msra.mxu0 0.0
        %1151 = vmatprep.subr.mxu0 0.0
        %1152 = vmatpush2.msra.mxu0 0.0
        %1153 = vmatprep.mubr.f32.mxu0 0.0
        %1154 = vmatmul.mubr.f32.gmra.mxu0 %v1087
        %v1155 = vpop.f32.mrf.mxu0
        %v1156 = vadd.f32 0.0, %v1155
        %v1157 = vpop.f32.mrf.mxu0
        %1158 = vdwg.mxu0
        %v1159 = vadd.f32 %v1074, %v1156
        %v1160 = vld [vmem:[%s6] sm:$0x1]
        %v1162 = vlaneseq
        %v1163 = vshrl.u32 %v1162, 7
        %v1164 = vsub.s32 0, %v1163
        %v1165 = vrot.slane %v1160, %v1164
        %v1167 = vadd.f32 %v1159, %v1165
        %1168 = vst [vmem:[#allocation3] sm:$0xff] %v1167
        %v1169 = vld [vmem:[#allocation3] ss:$2 sm:$0xf]
        %s1170 = scalar_lea.vmem [#allocation3], 1
        %v1171 = vld [vmem:[%s1170] ss:$2 sm:$0xf]
        %v1172 = vmax.f32 %v1169, %v1171
        %v1173 = vld [vmem:[%s5] sm:$0xff]
        %v1174 = vld [vmem:[%s5 + $0x8] sm:$0xff]
        %v1175 = vld [vmem:[%s5 + $0x10] sm:$0xff]
        %v1176 = vld [vmem:[%s5 + $0x18] sm:$0xff]
        %v1177 = vld [vmem:[%s5 + $0x20] sm:$0xff]
        %v1178 = vld [vmem:[%s5 + $0x28] sm:$0xff]
        %v1179 = vld [vmem:[%s5 + $0x30] sm:$0xff]
        %v1180 = vld [vmem:[%s5 + $0x38] sm:$0xff]
        %v1181 = vld [vmem:[%s5 + $0x40] sm:$0xff]
        %v1182 = vld [vmem:[%s5 + $0x48] sm:$0xff]
        %v1183 = vld [vmem:[%s5 + $0x50] sm:$0xff]
        %v1184 = vld [vmem:[%s5 + $0x58] sm:$0xff]
        %v1185 = vld [vmem:[%s5 + $0x60] sm:$0xff]
        %v1186 = vld [vmem:[%s5 + $0x68] sm:$0xff]
        %v1187 = vld [vmem:[%s5 + $0x70] sm:$0xff]
        %v1188 = vld [vmem:[%s5 + $0x78] sm:$0xff]
        %1189 = vmatprep.subr.mxu0 0.0
        %1190 = vmatpush1.msra.mxu0 %v1188
        %1191 = vmatprep.subr.mxu0 0.0
        %1192 = vmatpush1.msra.mxu0 %v1187
        %1193 = vmatprep.subr.mxu0 0.0
        %1194 = vmatpush1.msra.mxu0 %v1186
        %1195 = vmatprep.subr.mxu0 0.0
        %1196 = vmatpush1.msra.mxu0 %v1185
        %1197 = vmatprep.subr.mxu0 0.0
        %1198 = vmatpush1.msra.mxu0 %v1184
        %1199 = vmatprep.subr.mxu0 0.0
        %1200 = vmatpush1.msra.mxu0 %v1183
        %1201 = vmatprep.subr.mxu0 0.0
        %1202 = vmatpush1.msra.mxu0 %v1182
        %1203 = vmatprep.subr.mxu0 0.0
        %1204 = vmatpush1.msra.mxu0 %v1181
        %1205 = vmatprep.subr.mxu0 0.0
        %1206 = vmatpush1.msra.mxu0 %v1180
        %1207 = vmatprep.subr.mxu0 0.0
        %1208 = vmatpush1.msra.mxu0 %v1179
        %1209 = vmatprep.subr.mxu0 0.0
        %1210 = vmatpush1.msra.mxu0 %v1178
        %1211 = vmatprep.subr.mxu0 0.0
        %1212 = vmatpush1.msra.mxu0 %v1177
        %1213 = vmatprep.subr.mxu0 0.0
        %1214 = vmatpush1.msra.mxu0 %v1176
        %1215 = vmatprep.subr.mxu0 0.0
        %1216 = vmatpush1.msra.mxu0 %v1175
        %1217 = vmatprep.subr.mxu0 0.0
        %1218 = vmatpush1.msra.mxu0 %v1174
        %1219 = vmatprep.subr.mxu0 0.0
        %1220 = vmatpush1.msra.mxu0 %v1173
        %1221 = vmatprep.subr.mxu0 0.0
        %1222 = vmatpush2.msra.mxu0 0.0
        %1223 = vmatprep.subr.mxu0 0.0
        %1224 = vmatpush2.msra.mxu0 0.0
        %1225 = vmatprep.subr.mxu0 0.0
        %1226 = vmatpush2.msra.mxu0 0.0
        %1227 = vmatprep.subr.mxu0 0.0
        %1228 = vmatpush2.msra.mxu0 0.0
        %1229 = vmatprep.subr.mxu0 0.0
        %1230 = vmatpush2.msra.mxu0 0.0
        %1231 = vmatprep.subr.mxu0 0.0
        %1232 = vmatpush2.msra.mxu0 0.0
        %1233 = vmatprep.subr.mxu0 0.0
        %1234 = vmatpush2.msra.mxu0 0.0
        %1235 = vmatprep.subr.mxu0 0.0
        %1236 = vmatpush2.msra.mxu0 0.0
        %1237 = vmatprep.subr.mxu0 0.0
        %1238 = vmatpush2.msra.mxu0 0.0
        %1239 = vmatprep.subr.mxu0 0.0
        %1240 = vmatpush2.msra.mxu0 0.0
        %1241 = vmatprep.subr.mxu0 0.0
        %1242 = vmatpush2.msra.mxu0 0.0
        %1243 = vmatprep.subr.mxu0 0.0
        %1244 = vmatpush2.msra.mxu0 0.0
        %1245 = vmatprep.subr.mxu0 0.0
        %1246 = vmatpush2.msra.mxu0 0.0
        %1247 = vmatprep.subr.mxu0 0.0
        %1248 = vmatpush2.msra.mxu0 0.0
        %1249 = vmatprep.subr.mxu0 0.0
        %1250 = vmatpush2.msra.mxu0 0.0
        %1251 = vmatprep.subr.mxu0 0.0
        %1252 = vmatpush2.msra.mxu0 0.0
        %1253 = vmatprep.mubr.f32.mxu0 0.0
        %1254 = vmatmul.mubr.f32.gmra.mxu0 %v1172
        %v1255 = vpop.f32.mrf.mxu0
        %v1256 = vadd.f32 0.0, %v1255
        %v1257 = vpop.f32.mrf.mxu0
        %1258 = vdwg.mxu0
        %s1259 = scalar_lea.vmem %s5, 128
        %v1260 = vld [vmem:[%s1259] sm:$0xff]
        %v1261 = vld [vmem:[%s1259 + $0x8] sm:$0xff]
        %v1262 = vld [vmem:[%s1259 + $0x10] sm:$0xff]
        %v1263 = vld [vmem:[%s1259 + $0x18] sm:$0xff]
        %v1264 = vld [vmem:[%s1259 + $0x20] sm:$0xff]
        %v1265 = vld [vmem:[%s1259 + $0x28] sm:$0xff]
        %v1266 = vld [vmem:[%s1259 + $0x30] sm:$0xff]
        %v1267 = vld [vmem:[%s1259 + $0x38] sm:$0xff]
        %v1268 = vld [vmem:[%s1259 + $0x40] sm:$0xff]
        %v1269 = vld [vmem:[%s1259 + $0x48] sm:$0xff]
        %v1270 = vld [vmem:[%s1259 + $0x50] sm:$0xff]
        %v1271 = vld [vmem:[%s1259 + $0x58] sm:$0xff]
        %v1272 = vld [vmem:[%s1259 + $0x60] sm:$0xff]
        %v1273 = vld [vmem:[%s1259 + $0x68] sm:$0xff]
        %v1274 = vld [vmem:[%s1259 + $0x70] sm:$0xff]
        %v1275 = vld [vmem:[%s1259 + $0x78] sm:$0xff]
        %1276 = vmatprep.subr.mxu0 0.0
        %1277 = vmatpush1.msra.mxu0 %v1275
        %1278 = vmatprep.subr.mxu0 0.0
        %1279 = vmatpush1.msra.mxu0 %v1274
        %1280 = vmatprep.subr.mxu0 0.0
        %1281 = vmatpush1.msra.mxu0 %v1273
        %1282 = vmatprep.subr.mxu0 0.0
        %1283 = vmatpush1.msra.mxu0 %v1272
        %1284 = vmatprep.subr.mxu0 0.0
        %1285 = vmatpush1.msra.mxu0 %v1271
        %1286 = vmatprep.subr.mxu0 0.0
        %1287 = vmatpush1.msra.mxu0 %v1270
        %1288 = vmatprep.subr.mxu0 0.0
        %1289 = vmatpush1.msra.mxu0 %v1269
        %1290 = vmatprep.subr.mxu0 0.0
        %1291 = vmatpush1.msra.mxu0 %v1268
        %1292 = vmatprep.subr.mxu0 0.0
        %1293 = vmatpush1.msra.mxu0 %v1267
        %1294 = vmatprep.subr.mxu0 0.0
        %1295 = vmatpush1.msra.mxu0 %v1266
        %1296 = vmatprep.subr.mxu0 0.0
        %1297 = vmatpush1.msra.mxu0 %v1265
        %1298 = vmatprep.subr.mxu0 0.0
        %1299 = vmatpush1.msra.mxu0 %v1264
        %1300 = vmatprep.subr.mxu0 0.0
        %1301 = vmatpush1.msra.mxu0 %v1263
        %1302 = vmatprep.subr.mxu0 0.0
        %1303 = vmatpush1.msra.mxu0 %v1262
        %1304 = vmatprep.subr.mxu0 0.0
        %1305 = vmatpush1.msra.mxu0 %v1261
        %1306 = vmatprep.subr.mxu0 0.0
        %1307 = vmatpush1.msra.mxu0 %v1260
        %1308 = vmatprep.subr.mxu0 0.0
        %1309 = vmatpush2.msra.mxu0 0.0
        %1310 = vmatprep.subr.mxu0 0.0
        %1311 = vmatpush2.msra.mxu0 0.0
        %1312 = vmatprep.subr.mxu0 0.0
        %1313 = vmatpush2.msra.mxu0 0.0
        %1314 = vmatprep.subr.mxu0 0.0
        %1315 = vmatpush2.msra.mxu0 0.0
        %1316 = vmatprep.subr.mxu0 0.0
        %1317 = vmatpush2.msra.mxu0 0.0
        %1318 = vmatprep.subr.mxu0 0.0
        %1319 = vmatpush2.msra.mxu0 0.0
        %1320 = vmatprep.subr.mxu0 0.0
        %1321 = vmatpush2.msra.mxu0 0.0
        %1322 = vmatprep.subr.mxu0 0.0
        %1323 = vmatpush2.msra.mxu0 0.0
        %1324 = vmatprep.subr.mxu0 0.0
        %1325 = vmatpush2.msra.mxu0 0.0
        %1326 = vmatprep.subr.mxu0 0.0
        %1327 = vmatpush2.msra.mxu0 0.0
        %1328 = vmatprep.subr.mxu0 0.0
        %1329 = vmatpush2.msra.mxu0 0.0
        %1330 = vmatprep.subr.mxu0 0.0
        %1331 = vmatpush2.msra.mxu0 0.0
        %1332 = vmatprep.subr.mxu0 0.0
        %1333 = vmatpush2.msra.mxu0 0.0
        %1334 = vmatprep.subr.mxu0 0.0
        %1335 = vmatpush2.msra.mxu0 0.0
        %1336 = vmatprep.subr.mxu0 0.0
        %1337 = vmatpush2.msra.mxu0 0.0
        %1338 = vmatprep.subr.mxu0 0.0
        %1339 = vmatpush2.msra.mxu0 0.0
        %1340 = vmatprep.mubr.f32.mxu0 0.0
        %1341 = vmatmul.mubr.f32.gmra.mxu0 %v1172
        %v1342 = vpop.f32.mrf.mxu0
        %v1343 = vadd.f32 0.0, %v1342
        %v1344 = vpop.f32.mrf.mxu0
        %1345 = vdwg.mxu0
        %v1346 = vmax.f32 %v1256, %v1343
        %v1347 = vmul.f32 %v1346, 0.1
        %v1348 = vmax.f32 %v1346, %v1347
        %vm1349 = vcmask 519168
        %1350 = vst.msk [vmem:[#allocation4] sm:$0xf] %vm1349, %v1348
        %v1351 = vld [vmem:[#allocation4] ss:$4 sm:$0x1]
        %v1352 = vlaneseq
        %vm1353 = vcmp.ge.s32.totalorder %v1352, 0
        %vm1354 = vcmp.lt.s32.totalorder %v1352, 64
        %vm1355 = vmand %vm1353, %vm1354
        %1356 = vst.msk [vmem:[#allocation5] sm:$0x1] %vm1355, %v1351
        %s1357 = scalar_lea.vmem [#allocation4], 1
        %v1358 = vld [vmem:[%s1357] ss:$4 sm:$0x1]
        %v1361 = vunpack.c.l.s4 1966171168
        %v1362 = vunpack.c.0.s8 %v1361
        %v1363 = vlaneseq
        %v1364 = vshrl.u32 %v1363, 7
        %v1365 = vsub.s32 %v1362, %v1364
        %v1366 = vrot.slane %v1358, %v1365
        %v1368 = vunpack.c.l.s4 1966171168
        %v1369 = vunpack.c.0.s8 %v1368
        %v1370 = vlaneseq
        %v1371 = vshrl.u32 %v1370, 7
        %v1372 = vsub.s32 %v1369, %v1371
        %v1373 = vrot.slane %v1366, %v1372
        %1374 = vrot.lane.b32.xlu0 %v1373, 64
        %v1375 = vpop.permute.xlu0 %1374
        %vm1377 = vcmp.ge.s32.totalorder %v1352, 64
        %vm1378 = vcmp.lt.s32.totalorder %v1352, 128
        %vm1379 = vmand %vm1377, %vm1378
        %1380 = vst.msk [vmem:[#allocation5] sm:$0x1] %vm1379, %v1375
        %s1381 = scalar_lea.vmem [#allocation4], 2
        %v1382 = vld [vmem:[%s1381] ss:$4 sm:$0x1]
        %1383 = vst.msk [vmem:[#allocation5 + $0x1] sm:$0x1] %vm1355, %v1382
        %s1384 = scalar_lea.vmem [#allocation4], 3
        %v1385 = vld [vmem:[%s1384] ss:$4 sm:$0x1]
        %v1388 = vunpack.c.l.s4 1966171168
        %v1389 = vunpack.c.0.s8 %v1388
        %v1390 = vlaneseq
        %v1391 = vshrl.u32 %v1390, 7
        %v1392 = vsub.s32 %v1389, %v1391
        %v1393 = vrot.slane %v1385, %v1392
        %v1395 = vunpack.c.l.s4 1966171168
        %v1396 = vunpack.c.0.s8 %v1395
        %v1397 = vlaneseq
        %v1398 = vshrl.u32 %v1397, 7
        %v1399 = vsub.s32 %v1396, %v1398
        %v1400 = vrot.slane %v1393, %v1399
        %1401 = vrot.lane.b32.xlu0 %v1400, 64
        %v1402 = vpop.permute.xlu0 %1401
        %1404 = vst.msk [vmem:[#allocation5 + $0x1] sm:$0x1] %vm1379, %v1402
        %v1405 = vld [vmem:[#allocation5] sm:$0x3]
        %v1406 = vld [vmem:[%s7] sm:$0xff]
        %v1407 = vld [vmem:[%s7 + $0x8] sm:$0xff]
        %v1408 = vld [vmem:[%s7 + $0x10] sm:$0xff]
        %v1409 = vld [vmem:[%s7 + $0x18] sm:$0xff]
        %v1410 = vld [vmem:[%s7 + $0x20] sm:$0xff]
        %v1411 = vld [vmem:[%s7 + $0x28] sm:$0xff]
        %v1412 = vld [vmem:[%s7 + $0x30] sm:$0xff]
        %v1413 = vld [vmem:[%s7 + $0x38] sm:$0xff]
        %v1414 = vld [vmem:[%s7 + $0x40] sm:$0xff]
        %v1415 = vld [vmem:[%s7 + $0x48] sm:$0xff]
        %v1416 = vld [vmem:[%s7 + $0x50] sm:$0xff]
        %v1417 = vld [vmem:[%s7 + $0x58] sm:$0xff]
        %v1418 = vld [vmem:[%s7 + $0x60] sm:$0xff]
        %v1419 = vld [vmem:[%s7 + $0x68] sm:$0xff]
        %v1420 = vld [vmem:[%s7 + $0x70] sm:$0xff]
        %v1421 = vld [vmem:[%s7 + $0x78] sm:$0xff]
        %v1422 = vld [vmem:[%s7 + $0x80] sm:$0xff]
        %v1423 = vld [vmem:[%s7 + $0x88] sm:$0xff]
        %v1424 = vld [vmem:[%s7 + $0x90] sm:$0xff]
        %v1425 = vld [vmem:[%s7 + $0x98] sm:$0xff]
        %v1426 = vld [vmem:[%s7 + $0xa0] sm:$0xff]
        %v1427 = vld [vmem:[%s7 + $0xa8] sm:$0xff]
        %v1428 = vld [vmem:[%s7 + $0xb0] sm:$0xff]
        %v1429 = vld [vmem:[%s7 + $0xb8] sm:$0xff]
        %v1430 = vld [vmem:[%s7 + $0xc0] sm:$0xff]
        %v1431 = vld [vmem:[%s7 + $0xc8] sm:$0xff]
        %v1432 = vld [vmem:[%s7 + $0xd0] sm:$0xff]
        %v1433 = vld [vmem:[%s7 + $0xd8] sm:$0xff]
        %v1434 = vld [vmem:[%s7 + $0xe0] sm:$0xff]
        %v1435 = vld [vmem:[%s7 + $0xe8] sm:$0xff]
        %v1436 = vld [vmem:[%s7 + $0xf0] sm:$0xff]
        %v1437 = vld [vmem:[%s7 + $0xf8] sm:$0xff]
        %v1438 = vld [vmem:[%s8] sm:$0x1]
        %v1440 = vlaneseq
        %v1441 = vshrl.u32 %v1440, 7
        %v1442 = vsub.s32 0, %v1441
        %v1443 = vrot.slane %v1405, %v1442
        %v1444 = vlaneseq
        %v1445 = vshrl.u32 %v1444, 7
        %v1446 = vsub.s32 1, %v1445
        %v1447 = vrot.slane %v1405, %v1446
        %1450 = vmatprep.subr.mxu0 0.0
        %1451 = vmatpush1.msra.mxu0 %v1421
        %1452 = vmatprep.subr.mxu0 0.0
        %1453 = vmatpush1.msra.mxu0 %v1420
        %1454 = vmatprep.subr.mxu0 0.0
        %1455 = vmatpush1.msra.mxu0 %v1419
        %1456 = vmatprep.subr.mxu0 0.0
        %1457 = vmatpush1.msra.mxu0 %v1418
        %1458 = vmatprep.subr.mxu0 0.0
        %1459 = vmatpush1.msra.mxu0 %v1417
        %1460 = vmatprep.subr.mxu0 0.0
        %1461 = vmatpush1.msra.mxu0 %v1416
        %1462 = vmatprep.subr.mxu0 0.0
        %1463 = vmatpush1.msra.mxu0 %v1415
        %1464 = vmatprep.subr.mxu0 0.0
        %1465 = vmatpush1.msra.mxu0 %v1414
        %1466 = vmatprep.subr.mxu0 0.0
        %1467 = vmatpush1.msra.mxu0 %v1413
        %1468 = vmatprep.subr.mxu0 0.0
        %1469 = vmatpush1.msra.mxu0 %v1412
        %1470 = vmatprep.subr.mxu0 0.0
        %1471 = vmatpush1.msra.mxu0 %v1411
        %1472 = vmatprep.subr.mxu0 0.0
        %1473 = vmatpush1.msra.mxu0 %v1410
        %1474 = vmatprep.subr.mxu0 0.0
        %1475 = vmatpush1.msra.mxu0 %v1409
        %1476 = vmatprep.subr.mxu0 0.0
        %1477 = vmatpush1.msra.mxu0 %v1408
        %1478 = vmatprep.subr.mxu0 0.0
        %1479 = vmatpush1.msra.mxu0 %v1407
        %1480 = vmatprep.subr.mxu0 0.0
        %1481 = vmatpush1.msra.mxu0 %v1406
        %1482 = vmatprep.subr.mxu0 0.0
        %1483 = vmatpush2.msra.mxu0 %v1437
        %1484 = vmatprep.subr.mxu0 0.0
        %1485 = vmatpush2.msra.mxu0 %v1436
        %1486 = vmatprep.subr.mxu0 0.0
        %1487 = vmatpush2.msra.mxu0 %v1435
        %1488 = vmatprep.subr.mxu0 0.0
        %1489 = vmatpush2.msra.mxu0 %v1434
        %1490 = vmatprep.subr.mxu0 0.0
        %1491 = vmatpush2.msra.mxu0 %v1433
        %1492 = vmatprep.subr.mxu0 0.0
        %1493 = vmatpush2.msra.mxu0 %v1432
        %1494 = vmatprep.subr.mxu0 0.0
        %1495 = vmatpush2.msra.mxu0 %v1431
        %1496 = vmatprep.subr.mxu0 0.0
        %1497 = vmatpush2.msra.mxu0 %v1430
        %1498 = vmatprep.subr.mxu0 0.0
        %1499 = vmatpush2.msra.mxu0 %v1429
        %1500 = vmatprep.subr.mxu0 0.0
        %1501 = vmatpush2.msra.mxu0 %v1428
        %1502 = vmatprep.subr.mxu0 0.0
        %1503 = vmatpush2.msra.mxu0 %v1427
        %1504 = vmatprep.subr.mxu0 0.0
        %1505 = vmatpush2.msra.mxu0 %v1426
        %1506 = vmatprep.subr.mxu0 0.0
        %1507 = vmatpush2.msra.mxu0 %v1425
        %1508 = vmatprep.subr.mxu0 0.0
        %1509 = vmatpush2.msra.mxu0 %v1424
        %1510 = vmatprep.subr.mxu0 0.0
        %1511 = vmatpush2.msra.mxu0 %v1423
        %1512 = vmatprep.subr.mxu0 0.0
        %1513 = vmatpush2.msra.mxu0 %v1422
        %1514 = vmatprep.mubr.f32.mxu0 %v1447
        %1515 = vmatmul.mubr.f32.gmra.mxu0 %v1443
        %v1516 = vpop.f32.mrf.mxu0
        %v1517 = vadd.f32 %v1438, %v1516
        %v1518 = vpop.f32.mrf.mxu0
        %1519 = vdwg.mxu0
        %v1520 = vmul.f32 %v1517, 0.1
        %v1521 = vmax.f32 %v1517, %v1520
        %v1522 = vld [vmem:[%s9] sm:$0xff]
        %v1523 = vld [vmem:[%s9 + $0x8] sm:$0xff]
        %v1524 = vld [vmem:[%s9 + $0x10] sm:$0xff]
        %v1525 = vld [vmem:[%s9 + $0x18] sm:$0xff]
        %v1526 = vld [vmem:[%s10] sm:$0x1]
        %vm1527 = vcmask 261120
        %v1529 = vsel %vm1527, %v1521, 0
        %1531 = vmatprep.subr.mxu0 0.0
        %1532 = vmatpush1.msra.mxu0 0.0
        %1533 = vmatprep.subr.mxu0 0.0
        %1534 = vmatpush1.msra.mxu0 0.0
        %1535 = vmatprep.subr.mxu0 0.0
        %1536 = vmatpush1.msra.mxu0 0.0
        %1537 = vmatprep.subr.mxu0 0.0
        %1538 = vmatpush1.msra.mxu0 0.0
        %1539 = vmatprep.subr.mxu0 0.0
        %1540 = vmatpush1.msra.mxu0 0.0
        %1541 = vmatprep.subr.mxu0 0.0
        %1542 = vmatpush1.msra.mxu0 0.0
        %1543 = vmatprep.subr.mxu0 0.0
        %1544 = vmatpush1.msra.mxu0 0.0
        %1545 = vmatprep.subr.mxu0 0.0
        %1546 = vmatpush1.msra.mxu0 0.0
        %1547 = vmatprep.subr.mxu0 0.0
        %1548 = vmatpush1.msra.mxu0 0.0
        %1549 = vmatprep.subr.mxu0 0.0
        %1550 = vmatpush1.msra.mxu0 0.0
        %1551 = vmatprep.subr.mxu0 0.0
        %1552 = vmatpush1.msra.mxu0 0.0
        %1553 = vmatprep.subr.mxu0 0.0
        %1554 = vmatpush1.msra.mxu0 0.0
        %1555 = vmatprep.subr.mxu0 0.0
        %1556 = vmatpush1.msra.mxu0 %v1525
        %1557 = vmatprep.subr.mxu0 0.0
        %1558 = vmatpush1.msra.mxu0 %v1524
        %1559 = vmatprep.subr.mxu0 0.0
        %1560 = vmatpush1.msra.mxu0 %v1523
        %1561 = vmatprep.subr.mxu0 0.0
        %1562 = vmatpush1.msra.mxu0 %v1522
        %1563 = vmatprep.subr.mxu0 0.0
        %1564 = vmatpush2.msra.mxu0 0.0
        %1565 = vmatprep.subr.mxu0 0.0
        %1566 = vmatpush2.msra.mxu0 0.0
        %1567 = vmatprep.subr.mxu0 0.0
        %1568 = vmatpush2.msra.mxu0 0.0
        %1569 = vmatprep.subr.mxu0 0.0
        %1570 = vmatpush2.msra.mxu0 0.0
        %1571 = vmatprep.subr.mxu0 0.0
        %1572 = vmatpush2.msra.mxu0 0.0
        %1573 = vmatprep.subr.mxu0 0.0
        %1574 = vmatpush2.msra.mxu0 0.0
        %1575 = vmatprep.subr.mxu0 0.0
        %1576 = vmatpush2.msra.mxu0 0.0
        %1577 = vmatprep.subr.mxu0 0.0
        %1578 = vmatpush2.msra.mxu0 0.0
        %1579 = vmatprep.subr.mxu0 0.0
        %1580 = vmatpush2.msra.mxu0 0.0
        %1581 = vmatprep.subr.mxu0 0.0
        %1582 = vmatpush2.msra.mxu0 0.0
        %1583 = vmatprep.subr.mxu0 0.0
        %1584 = vmatpush2.msra.mxu0 0.0
        %1585 = vmatprep.subr.mxu0 0.0
        %1586 = vmatpush2.msra.mxu0 0.0
        %1587 = vmatprep.subr.mxu0 0.0
        %1588 = vmatpush2.msra.mxu0 0.0
        %1589 = vmatprep.subr.mxu0 0.0
        %1590 = vmatpush2.msra.mxu0 0.0
        %1591 = vmatprep.subr.mxu0 0.0
        %1592 = vmatpush2.msra.mxu0 0.0
        %1593 = vmatprep.subr.mxu0 0.0
        %1594 = vmatpush2.msra.mxu0 0.0
        %1595 = vmatprep.mubr.f32.mxu0 0.0
        %1596 = vmatmul.mubr.f32.gmra.mxu0 %v1529
        %v1597 = vpop.f32.mrf.mxu0
        %v1598 = vadd.f32 %v1526, %v1597
        %v1599 = vpop.f32.mrf.mxu0
        %1600 = vdwg.mxu0
        %1601 = vst [vmem:[%s379] sm:$0x1] %v1598
        %s1602 = sand.u32 %s269, 1
        %s1603 = scalar_lea.sflag [#allocation7], %s1602
        %s1604 = sand.u32 %s269, 1
        %s1605 = scalar_lea.vmem [#allocation6], %s1604
        // Predicated region
        $region65: #{tpu_custom_call.1} parent=63 // pred_check
          %p1606 = pneg %p279
        $region66: #{tpu_custom_call.1} parent=63 // pred_check_branch
          %1608 = sbr.rel (%p1606) target = $region68
        $region67: #{tpu_custom_call.1} parent=63 // pred_region
          %s1610 = ssub.s32 16, 16
          %1611 = vsyncadd %s1603, %s1610
          %s1612 = smul.addr %s25, 16
          %s1613 = scalar_lea.hbm %s11, %s1612
          %s1615 = sshll.u32 %s1605, 4
          %s1616 = int_to_ptr.vmem [resolvable:$true] %s1615
          %1618 = dma.vmem_to_hbm [thread:$0]  %s1616, 16, %s1613, %s1603
        $region68: #{tpu_custom_call.1} parent=63 // pred_fallthru
          _
      $region64: #{tpu_custom_call.1} parent=5 // pred_fallthru
        _
      %p1619 = scmp.le.s32.totalorder 2, %s20
      // Predicated region
      $region69: #{tpu_custom_call.1} parent=5 // pred_check
        %p1620 = pneg %p1619
      $region70: #{tpu_custom_call.1} parent=5 // pred_check_branch
        %1622 = sbr.rel (%p1620) target = $region72
      $region71: #{tpu_custom_call.1} parent=5 // pred_region
        %s1623 = ssub.s32 %s20, 2
        // Predicated region
        $region73: #{tpu_custom_call.1} parent=71 // pred_check
          %p1624 = pneg %p285
        $region74: #{tpu_custom_call.1} parent=71 // pred_check_branch
          %1626 = sbr.rel (%p1624) target = $region76
        $region75: #{tpu_custom_call.1} parent=71 // pred_region
          %s1627 = sand.u32 %s270, 1
          %s1628 = scalar_lea.sflag [#allocation7], %s1627
          %s1629 = sand.u32 %s270, 1
          %s1630 = scalar_lea.vmem [#allocation6], %s1629
          %1631 = dma.done %s1628, 16
        $region76: #{tpu_custom_call.1} parent=71 // pred_fallthru
          _
      $region72: #{tpu_custom_call.1} parent=5 // pred_fallthru
        _
    $region6: #{tpu_custom_call.1} parent=1 // loop_footer
      %s24 = sadd.s32 1, %s20
    $region7: #{tpu_custom_call.1} parent=1 // loop_footer_branch
      %19 = sbr.rel target = $region3
    $region8: #{tpu_custom_call.1} parent=1 // loop_exit
      _
    %1632 = vsyncpa [#allocation7], 1
    %s1633 = scalar_lea.sflag [#allocation7], 1
    %1634 = vsyncpa %s1633, 1

</llo_original>
